<compile_context>
chip_gen: v5e
topology: v5e:2x2
jax: 0.10.0
libtpu: 0.0.40
codegen_flags: <defaults>
</compile_context>

<pallas_src>
import math
import functools

import jax
import jax.numpy as jnp
from jax.experimental import pallas as pl
from jax.experimental.pallas import tpu as pltpu


def global_attention_kernel(locx_ref, glox_ref,
                            wq_ref, bq_ref,
                            wkv_ref, bkv_ref,
                            wo_ref, bo_ref,
                            out_ref,
                            *, num_heads: int, head_dim: int, hidden: int):
    locx = locx_ref[...]          # [Tq,  H]   (batch dim squeezed by BlockSpec)
    glox = glox_ref[...]          # [Skv, H]

    scale = 1.0 / math.sqrt(head_dim)

    # Q projection; fold the 1/sqrt(dh) scale in once here.
    q = (jnp.dot(locx, wq_ref[...], preferred_element_type=jnp.float32)
         + bq_ref[...]) * scale                                      # [Tq, H]

    # Fused K/V projection: one [Skv,H] @ [H,2H] MXU op instead of two.
    kv = (jnp.dot(glox, wkv_ref[...], preferred_element_type=jnp.float32)
          + bkv_ref[...])                                            # [Skv, 2H]
    k = kv[:, :hidden]
    v = kv[:, hidden:]

    tq = q.shape[0]
    skv = k.shape[0]

    # Head split: [S, H] -> [nh, S, dh], batch-leading for batched contractions.
    qh = jnp.transpose(q.reshape(tq, num_heads, head_dim), (1, 0, 2))
    kh = jnp.transpose(k.reshape(skv, num_heads, head_dim), (1, 0, 2))
    vh = jnp.transpose(v.reshape(skv, num_heads, head_dim), (1, 0, 2))

    # Scores for all heads at once: [nh, Tq, Skv].
    s = jnp.einsum("hqd,hkd->hqk", qh, kh, preferred_element_type=jnp.float32)

    # Numerically stable softmax over keys; attn_dropout(p=0.0) is identity.
    m = jnp.max(s, axis=-1, keepdims=True)
    e = jnp.exp(s - m)
    p = e * pl.reciprocal(jnp.sum(e, axis=-1, keepdims=True), approx=True)

    # Context for all heads: [nh, Tq, dh].
    ctx = jnp.einsum("hqk,hkd->hqd", p, vh, preferred_element_type=jnp.float32)

    # Merge heads -> [Tq, H]; single output-projection matmul.
    ctx = jnp.transpose(ctx, (1, 0, 2)).reshape(tq, hidden)
    out = (jnp.dot(ctx, wo_ref[...], preferred_element_type=jnp.float32)
           + bo_ref[...])
    # proj_dropout(p=0.0) is identity.
    out_ref[...] = out.astype(out_ref.dtype)


def global_attention(locx, glox, params, *, num_heads, q_tile=128):
    """locx: [B, Sq, H], glox: [B, Skv, H] -> [B, Sq, H]."""
    B, Sq, H = locx.shape
    _, Skv, _ = glox.shape
    assert H % num_heads == 0, "hidden must divide num_heads"
    head_dim = H // num_heads

    tq = min(Sq, q_tile)
    assert Sq % tq == 0, "Sq must be divisible by the Q tile size"
    n_qt = Sq // tq

    wq, bq, wk, bk, wv, bv, wo, bo = params
    # Fuse K and V projection weights/biases host-side: [H, 2H] / [1, 2H].
    wkv = jnp.concatenate([wk, wv], axis=1)
    bkv = jnp.concatenate([bk, bv]).reshape(1, 2 * H)
    bq2 = bq.reshape(1, H)
    bo2 = bo.reshape(1, H)

    kernel = functools.partial(global_attention_kernel,
                               num_heads=num_heads, head_dim=head_dim,
                               hidden=H)

    return pl.pallas_call(
        kernel,
        out_shape=jax.ShapeDtypeStruct((B, Sq, H), locx.dtype),
        grid_spec=pltpu.PrefetchScalarGridSpec(
            num_scalar_prefetch=0,
            grid=(B, n_qt),                                       # batch x Q tiles
            in_specs=[
                pl.BlockSpec((None, tq, H), lambda b, i: (b, i, 0)),   # locx tile
                pl.BlockSpec((None, Skv, H), lambda b, i: (b, 0, 0)),  # glox (full KV)
                pl.BlockSpec((H, H), lambda b, i: (0, 0)),             # wq
                pl.BlockSpec((1, H), lambda b, i: (0, 0)),             # bq
                pl.BlockSpec((H, 2 * H), lambda b, i: (0, 0)),         # wkv (fused)
                pl.BlockSpec((1, 2 * H), lambda b, i: (0, 0)),         # bkv (fused)
                pl.BlockSpec((H, H), lambda b, i: (0, 0)),             # wo
                pl.BlockSpec((1, H), lambda b, i: (0, 0)),             # bo
            ],
            out_specs=pl.BlockSpec((None, tq, H), lambda b, i: (b, i, 0)),
        ),
        compiler_params=pltpu.CompilerParams(
            dimension_semantics=("parallel", "parallel")),
    )(locx, glox, wq, bq2, wkv, bkv, wo, bo2)


def global_attention_ref(locx, glox, params, *, num_heads):
    """Pure-JAX reference mirroring the PyTorch forward."""
    wq, bq, wk, bk, wv, bv, wo, bo = params
    B, Sq, H = locx.shape
    Skv = glox.shape[1]
    dh = H // num_heads

    def split_heads(x, S):
        return x.reshape(B, S, num_heads, dh).transpose(0, 2, 1, 3)

    q = split_heads(locx @ wq + bq, Sq)
    k = split_heads(glox @ wk + bk, Skv)
    v = split_heads(glox @ wv + bv, Skv)
    scores = jnp.einsum("bhqd,bhkd->bhqk", q, k) / math.sqrt(dh)
    probs = jax.nn.softmax(scores, axis=-1)
    ctx = jnp.einsum("bhqk,bhkd->bhqd", probs, v)
    ctx = ctx.transpose(0, 2, 1, 3).reshape(B, Sq, H)
    return ctx @ wo + bo


if __name__ == "__main__":
    # Small shapes consistent with the module; H=128 keeps every block lane-dense.
    B, Sq, Skv = 2, 16, 16
    hidden = 128
    num_heads = 8

    key = jax.random.PRNGKey(0)
    keys = jax.random.split(key, 10)
    locx = jax.random.normal(keys[0], (B, Sq, hidden), dtype=jnp.float32)
    glox = jax.random.normal(keys[1], (B, Skv, hidden), dtype=jnp.float32)

    def init_linear(kw, kb, fan_in, fan_out):
        bound = 1.0 / math.sqrt(fan_in)
        w = jax.random.uniform(kw, (fan_in, fan_out), jnp.float32, -bound, bound)
        b = jax.random.uniform(kb, (fan_out,), jnp.float32, -bound, bound)
        return w, b

    wq, bq = init_linear(keys[2], keys[3], hidden, hidden)
    wk, bk = init_linear(keys[4], keys[5], hidden, hidden)
    wv, bv = init_linear(keys[6], keys[7], hidden, hidden)
    wo, bo = init_linear(keys[8], keys[9], hidden, hidden)
    params = (wq, bq, wk, bk, wv, bv, wo, bo)

    out = global_attention(locx, glox, params, num_heads=num_heads)
    out = jax.block_until_ready(out)

    ref = global_attention_ref(locx, glox, params, num_heads=num_heads)
    assert out.shape == (B, Sq, hidden)
    # Tolerance loosened slightly vs. exact f32 because the softmax denominator
    # uses the EUP approximate reciprocal (pl.reciprocal(..., approx=True)).
    assert jnp.allclose(out, ref, atol=1e-2, rtol=1e-2), "mismatch vs reference"

    print("KERNEL_OK")
</pallas_src>

<mosaic_0001>
module attributes {stable_mosaic.version = 11 : i64} {
  func.func @global_attention_kernel(%arg0: i32, %arg1: i32, %arg2: memref<1x16x128xf32, #tpu.memory_space<vmem>>, %arg3: memref<1x16x128xf32, #tpu.memory_space<vmem>>, %arg4: memref<128x128xf32, #tpu.memory_space<vmem>>, %arg5: memref<1x128xf32, #tpu.memory_space<vmem>>, %arg6: memref<128x256xf32, #tpu.memory_space<vmem>>, %arg7: memref<1x256xf32, #tpu.memory_space<vmem>>, %arg8: memref<128x128xf32, #tpu.memory_space<vmem>>, %arg9: memref<1x128xf32, #tpu.memory_space<vmem>>, %arg10: memref<1x16x128xf32, #tpu.memory_space<vmem>>) attributes {dimension_semantics = [#tpu.dimension_semantics<parallel>, #tpu.dimension_semantics<parallel>], iteration_bounds = array<i64: 2, 1>, scalar_prefetch = 0 : i64, scratch_operands = 0 : i64, tpu.core_type = #tpu.core_type<tc>, window_params = [{transform_indices = @transform_0, window_bounds = array<i64: 1, 16, 128>}, {transform_indices = @transform_1, window_bounds = array<i64: 1, 16, 128>}, {pipeline_mode = #tpu.pipeline_mode<synchronous>, transform_indices = @transform_2, window_bounds = array<i64: 128, 128>}, {pipeline_mode = #tpu.pipeline_mode<synchronous>, transform_indices = @transform_3, window_bounds = array<i64: 1, 128>}, {pipeline_mode = #tpu.pipeline_mode<synchronous>, transform_indices = @transform_4, window_bounds = array<i64: 128, 256>}, {pipeline_mode = #tpu.pipeline_mode<synchronous>, transform_indices = @transform_5, window_bounds = array<i64: 1, 256>}, {pipeline_mode = #tpu.pipeline_mode<synchronous>, transform_indices = @transform_6, window_bounds = array<i64: 128, 128>}, {pipeline_mode = #tpu.pipeline_mode<synchronous>, transform_indices = @transform_7, window_bounds = array<i64: 1, 128>}, {transform_indices = @transform_8, window_bounds = array<i64: 1, 16, 128>}]} {
    %c0 = arith.constant 0 : index
    %c0_0 = arith.constant 0 : index
    %c0_1 = arith.constant 0 : index
    %0 = vector.load %arg2[%c0, %c0_0, %c0_1] : memref<1x16x128xf32, #tpu.memory_space<vmem>>, vector<1x16x128xf32>
    %1 = vector.shape_cast %0 : vector<1x16x128xf32> to vector<16x128xf32>
    %c0_2 = arith.constant 0 : index
    %c0_3 = arith.constant 0 : index
    %c0_4 = arith.constant 0 : index
    %2 = vector.load %arg3[%c0_2, %c0_3, %c0_4] : memref<1x16x128xf32, #tpu.memory_space<vmem>>, vector<1x16x128xf32>
    %3 = vector.shape_cast %2 : vector<1x16x128xf32> to vector<16x128xf32>
    %c0_5 = arith.constant 0 : index
    %c0_6 = arith.constant 0 : index
    %4 = vector.load %arg4[%c0_5, %c0_6] : memref<128x128xf32, #tpu.memory_space<vmem>>, vector<128x128xf32>
    %cst = arith.constant dense<0.000000e+00> : vector<16x128xf32>
    %5 = tpu.matmul %1, %4, %cst {dimension_numbers = #tpu.dot_dimension_numbers<[1], [0], [0], [1], [0, 0, 1, 1], [], []>} : vector<16x128xf32>, vector<128x128xf32>, vector<16x128xf32> -> vector<16x128xf32>
    %c0_7 = arith.constant 0 : index
    %c0_8 = arith.constant 0 : index
    %6 = vector.load %arg5[%c0_7, %c0_8] : memref<1x128xf32, #tpu.memory_space<vmem>>, vector<1x128xf32>
    %7 = vector.broadcast %6 : vector<1x128xf32> to vector<16x128xf32>
    %8 = arith.addf %5, %7 : vector<16x128xf32>
    %cst_9 = arith.constant 2.500000e-01 : f32
    %9 = vector.broadcast %cst_9 : f32 to vector<16x128xf32>
    %10 = arith.mulf %8, %9 : vector<16x128xf32>
    %c0_10 = arith.constant 0 : index
    %c0_11 = arith.constant 0 : index
    %11 = vector.load %arg6[%c0_10, %c0_11] : memref<128x256xf32, #tpu.memory_space<vmem>>, vector<128x256xf32>
    %cst_12 = arith.constant dense<0.000000e+00> : vector<16x256xf32>
    %12 = tpu.matmul %3, %11, %cst_12 {dimension_numbers = #tpu.dot_dimension_numbers<[1], [0], [0], [1], [0, 0, 1, 1], [], []>} : vector<16x128xf32>, vector<128x256xf32>, vector<16x256xf32> -> vector<16x256xf32>
    %c0_13 = arith.constant 0 : index
    %c0_14 = arith.constant 0 : index
    %13 = vector.load %arg7[%c0_13, %c0_14] : memref<1x256xf32, #tpu.memory_space<vmem>>, vector<1x256xf32>
    %14 = vector.broadcast %13 : vector<1x256xf32> to vector<16x256xf32>
    %15 = arith.addf %12, %14 : vector<16x256xf32>
    %16 = vector.extract_strided_slice %15 {offsets = [0, 0], sizes = [16, 128], strides = [1, 1]} : vector<16x256xf32> to vector<16x128xf32>
    %17 = vector.extract_strided_slice %15 {offsets = [0, 128], sizes = [16, 128], strides = [1, 1]} : vector<16x256xf32> to vector<16x128xf32>
    %18 = vector.shape_cast %10 : vector<16x128xf32> to vector<16x8x16xf32>
    %19 = tpu.transpose %18, [1, 0, 2] : vector<16x8x16xf32> -> vector<8x16x16xf32>
    %20 = vector.shape_cast %16 : vector<16x128xf32> to vector<16x8x16xf32>
    %21 = tpu.transpose %20, [1, 0, 2] : vector<16x8x16xf32> -> vector<8x16x16xf32>
    %22 = vector.shape_cast %17 : vector<16x128xf32> to vector<16x8x16xf32>
    %23 = tpu.transpose %22, [1, 0, 2] : vector<16x8x16xf32> -> vector<8x16x16xf32>
    "tpu.trace_start"() <{level = 10 : i32, message = "hqd,hkd->hqk"}> : () -> ()
    %cst_15 = arith.constant dense<0.000000e+00> : vector<8x16x16xf32>
    %24 = tpu.matmul %19, %21, %cst_15 {dimension_numbers = #tpu.dot_dimension_numbers<[2], [2], [1], [1], [0, 0, 0, 1, 1, 1], [0], [0]>} : vector<8x16x16xf32>, vector<8x16x16xf32>, vector<8x16x16xf32> -> vector<8x16x16xf32>
    "tpu.trace_stop"() : () -> ()
    %cst_16 = arith.constant dense<0xFF800000> : vector<8x16xf32>
    %25 = vector.multi_reduction <maximumf>, %24, %cst_16 [2] : vector<8x16x16xf32> to vector<8x16xf32>
    %26 = vector.shape_cast %25 : vector<8x16xf32> to vector<8x16x1xf32>
    %27 = vector.broadcast %26 : vector<8x16x1xf32> to vector<8x16x16xf32>
    %28 = arith.subf %24, %27 : vector<8x16x16xf32>
    %29 = math.exp %28 : vector<8x16x16xf32>
    %cst_17 = arith.constant dense<0.000000e+00> : vector<8x16xf32>
    %30 = vector.multi_reduction <add>, %29, %cst_17 [2] : vector<8x16x16xf32> to vector<8x16xf32>
    %31 = vector.shape_cast %30 : vector<8x16xf32> to vector<8x16x1xf32>
    %32 = tpu.reciprocal %31 {approx = true} : vector<8x16x1xf32> -> vector<8x16x1xf32>
    %33 = vector.broadcast %32 : vector<8x16x1xf32> to vector<8x16x16xf32>
    %34 = arith.mulf %29, %33 : vector<8x16x16xf32>
    "tpu.trace_start"() <{level = 10 : i32, message = "hqk,hkd->hqd"}> : () -> ()
    %cst_18 = arith.constant dense<0.000000e+00> : vector<8x16x16xf32>
    %35 = tpu.matmul %34, %23, %cst_18 {dimension_numbers = #tpu.dot_dimension_numbers<[2], [1], [1], [2], [0, 0, 0, 1, 1, 2], [0], [0]>} : vector<8x16x16xf32>, vector<8x16x16xf32>, vector<8x16x16xf32> -> vector<8x16x16xf32>
    "tpu.trace_stop"() : () -> ()
    %36 = tpu.transpose %35, [1, 0, 2] : vector<8x16x16xf32> -> vector<16x8x16xf32>
    %37 = vector.shape_cast %36 : vector<16x8x16xf32> to vector<16x128xf32>
    %c0_19 = arith.constant 0 : index
    %c0_20 = arith.constant 0 : index
    %38 = vector.load %arg8[%c0_19, %c0_20] : memref<128x128xf32, #tpu.memory_space<vmem>>, vector<128x128xf32>
    %cst_21 = arith.constant dense<0.000000e+00> : vector<16x128xf32>
    %39 = tpu.matmul %37, %38, %cst_21 {dimension_numbers = #tpu.dot_dimension_numbers<[1], [0], [0], [1], [0, 0, 1, 1], [], []>} : vector<16x128xf32>, vector<128x128xf32>, vector<16x128xf32> -> vector<16x128xf32>
    %c0_22 = arith.constant 0 : index
    %c0_23 = arith.constant 0 : index
    %40 = vector.load %arg9[%c0_22, %c0_23] : memref<1x128xf32, #tpu.memory_space<vmem>>, vector<1x128xf32>
    %41 = vector.broadcast %40 : vector<1x128xf32> to vector<16x128xf32>
    %42 = arith.addf %39, %41 : vector<16x128xf32>
    %c0_24 = arith.constant 0 : index
    %c0_25 = arith.constant 0 : index
    %c0_26 = arith.constant 0 : index
    %43 = vector.load %arg10[%c0_24, %c0_25, %c0_26] : memref<1x16x128xf32, #tpu.memory_space<vmem>>, vector<1x16x128xf32>
    %44 = vector.shape_cast %43 : vector<1x16x128xf32> to vector<16x128xf32>
    %45 = vector.shape_cast %42 : vector<16x128xf32> to vector<1x16x128xf32>
    tpu.vector_store %arg10[%c0_24, %c0_25, %c0_26], %45 {strides = array<i32>} : memref<1x16x128xf32, #tpu.memory_space<vmem>>, vector<1x16x128xf32>,
    return
  }
  func.func @transform_0(%arg0: i32, %arg1: i32) -> (i32, i32, i32) {
    %c0_i32 = arith.constant 0 : i32
    %c0_i32_0 = arith.constant 0 : i32
    return %arg0, %arg1, %c0_i32 : i32, i32, i32
  }
  func.func @transform_1(%arg0: i32, %arg1: i32) -> (i32, i32, i32) {
    %c0_i32 = arith.constant 0 : i32
    %c0_i32_0 = arith.constant 0 : i32
    %c0_i32_1 = arith.constant 0 : i32
    return %arg0, %c0_i32, %c0_i32_0 : i32, i32, i32
  }
  func.func @transform_2(%arg0: i32, %arg1: i32) -> (i32, i32) {
    %c0_i32 = arith.constant 0 : i32
    %c0_i32_0 = arith.constant 0 : i32
    %c0_i32_1 = arith.constant 0 : i32
    return %c0_i32, %c0_i32_0 : i32, i32
  }
  func.func @transform_3(%arg0: i32, %arg1: i32) -> (i32, i32) {
    %c0_i32 = arith.constant 0 : i32
    %c0_i32_0 = arith.constant 0 : i32
    %c0_i32_1 = arith.constant 0 : i32
    return %c0_i32, %c0_i32_0 : i32, i32
  }
  func.func @transform_4(%arg0: i32, %arg1: i32) -> (i32, i32) {
    %c0_i32 = arith.constant 0 : i32
    %c0_i32_0 = arith.constant 0 : i32
    %c0_i32_1 = arith.constant 0 : i32
    return %c0_i32, %c0_i32_0 : i32, i32
  }
  func.func @transform_5(%arg0: i32, %arg1: i32) -> (i32, i32) {
    %c0_i32 = arith.constant 0 : i32
    %c0_i32_0 = arith.constant 0 : i32
    %c0_i32_1 = arith.constant 0 : i32
    return %c0_i32, %c0_i32_0 : i32, i32
  }
  func.func @transform_6(%arg0: i32, %arg1: i32) -> (i32, i32) {
    %c0_i32 = arith.constant 0 : i32
    %c0_i32_0 = arith.constant 0 : i32
    %c0_i32_1 = arith.constant 0 : i32
    return %c0_i32, %c0_i32_0 : i32, i32
  }
  func.func @transform_7(%arg0: i32, %arg1: i32) -> (i32, i32) {
    %c0_i32 = arith.constant 0 : i32
    %c0_i32_0 = arith.constant 0 : i32
    %c0_i32_1 = arith.constant 0 : i32
    return %c0_i32, %c0_i32_0 : i32, i32
  }
  func.func @transform_8(%arg0: i32, %arg1: i32) -> (i32, i32, i32) {
    %c0_i32 = arith.constant 0 : i32
    %c0_i32_0 = arith.constant 0 : i32
    return %arg0, %arg1, %c0_i32 : i32, i32, i32
  }
}

</mosaic_0001>

<llo_original>
// kernel: tpu_custom_call.1
$region0: #{tpu_custom_call.1}
  #allocation0 [shape = 'u32[]', space=smem, size = 0x4, offset = 0x4, fixed_abs, tag = 'smem constant byte address 0x4 - core index']
  #allocation1 [shape = 'u32[72,128]{1,0:T(1,128)}', space=vmem, size = 0x9000, scoped, tag = 'internal scratch']
  %s0 = inlined_call_operand.hbm [shape: f32[2,16,128], index: 0, kind: input, shape index: {}]
  %s1 = inlined_call_operand.hbm [shape: f32[2,16,128], index: 1, kind: input, shape index: {}]
  %s2 = inlined_call_operand.hbm [shape: f32[128,128], index: 2, kind: input, shape index: {}]
  %s3 = inlined_call_operand.vmem [shape: f32[1,128], index: 3, kind: input, shape index: {}]
  %s4 = inlined_call_operand.hbm [shape: f32[128,256], index: 4, kind: input, shape index: {}]
  %s5 = inlined_call_operand.vmem [shape: f32[1,256], index: 5, kind: input, shape index: {}]
  %s6 = inlined_call_operand.hbm [shape: f32[128,128], index: 6, kind: input, shape index: {}]
  %s7 = inlined_call_operand.vmem [shape: f32[1,128], index: 7, kind: input, shape index: {}]
  %s8 = inlined_call_operand.hbm [shape: f32[2,16,128], index: 8, kind: output, shape index: {}]
  %s9 = sld [smem:[#allocation0]]
  $region85: #{tpu_custom_call.1} parent=0
    _
  %s11 = ssub.s32 1, %s9
  %s12 = scalar_select 0, %s11, %s9
  $region1: #{tpu_custom_call.1} parent=0
    #allocation2 [shape = 'u8[16384]{0}', space=vmem, size = 0x4000, scoped, tag = 'input window, operand 0']
    #allocation3 [shape = 's32[2]{0}', space=sflag, size = 0x8, scoped, tag = 'scoped memory for tpu_custom_call.1']
    #allocation4 [shape = 's32[2]{0}', space=sflag, size = 0x8, scoped, tag = 'scoped memory for tpu_custom_call.1']
    #allocation5 [shape = 'u8[16384]{0}', space=vmem, size = 0x4000, scoped, tag = 'input window, operand 1']
    #allocation6 [shape = 's32[2]{0}', space=sflag, size = 0x8, scoped, tag = 'scoped memory for tpu_custom_call.1']
    #allocation7 [shape = 'u8[65536]{0}', space=vmem, size = 0x10000, scoped, tag = 'input window, operand 2, single buffered']
    #allocation8 [shape = 'u8[131072]{0}', space=vmem, size = 0x20000, scoped, tag = 'input window, operand 4, single buffered']
    #allocation9 [shape = 's32[1]{0}', space=sflag, size = 0x4, scoped, tag = 'scoped memory for tpu_custom_call.1']
    #allocation10 [shape = 'u8[65536]{0}', space=vmem, size = 0x10000, scoped, tag = 'input window, operand 6, single buffered']
    #allocation11 [shape = 'u8[16384]{0}', space=vmem, size = 0x4000, scoped, tag = 'output window, operand 0']
    %13 = vsyncpa [#allocation3], 0
    %s14 = scalar_lea.sflag [#allocation3], 1
    %15 = vsyncpa %s14, 0
    %16 = vsyncpa [#allocation6], 0
    %s17 = scalar_lea.sflag [#allocation6], 1
    %18 = vsyncpa %s17, 0
    %19 = vsyncpa [#allocation9], 0
    %20 = vsyncpa [#allocation4], 0
    %s21 = scalar_lea.sflag [#allocation4], 1
    %22 = vsyncpa %s21, 0
    loop: start=0, step=1, limit=4
    $region2: #{tpu_custom_call.1} parent=1 // loop_pre_header
      _
    $region3: #{tpu_custom_call.1} parent=1 // loop_header
      %s24 = sphi 0, %s28
      %p25 = scmp.ge.s32.totalorder %s24, 4
      %s31 = sphi 0, %s43
      %s32 = sphi 0, %s39
      %s33 = sphi 0, %s31
      %s34 = sphi 0, %s32
      %s35 = sphi 0, %s33
      %s36 = sphi 0, %s34
      %s48 = sphi 0, %s50
      %s51 = sphi 0, %s48
      %s52 = sphi 0, %s51
      %s68 = sphi 0, %s52
      %s74 = sphi 0, %s76
      %s77 = sphi 0, %s74
      %s78 = sphi 0, %s77
      %s94 = sphi 0, %s78
      %s98 = sphi 0, %s98
      %s100 = sphi 0, %s98
      %s101 = sphi 0, %s100
      %s115 = sphi 0, %s101
      %s119 = sphi 0, %s119
      %s121 = sphi 0, %s119
      %s122 = sphi 0, %s121
      %s136 = sphi 0, %s122
      %s140 = sphi 0, %s140
      %s142 = sphi 0, %s140
      %s143 = sphi 0, %s142
      %s157 = sphi 0, %s143
      %s161 = sphi 0, %s161
      %s163 = sphi 0, %s161
      %s164 = sphi 0, %s163
      %s178 = sphi 0, %s164
      %s182 = sphi 0, %s182
      %s184 = sphi 0, %s182
      %s185 = sphi 0, %s184
      %s199 = sphi 0, %s185
      %s203 = sphi 0, %s203
      %s205 = sphi 0, %s203
      %s206 = sphi 0, %s205
      %s220 = sphi 0, %s206
      %s228 = sphi 0, %s230
      %s231 = sphi 0, %s228
      %s232 = sphi 0, %s231
      %s248 = sphi 0, %s232
    $region4: #{tpu_custom_call.1} parent=1 // loop_header_branch
      %27 = sbr.rel (%p25) target = $region8
    $region5: #{tpu_custom_call.1} parent=1 // loop_body
      %s29 = ssub.s32 %s24, 1
      %s30 = ssub.s32 %s24, 2
      %s37 = sadd.s32 1, %s32
      %p38 = scmp.ge.s32.totalorder %s37, 1
      %s39 = scalar_select %p38, 0, %s37
      %s40 = sadd.s32 1, %s31
      %s41 = scalar_select %p38, %s40, %s31
      %p42 = scmp.ge.s32.totalorder %s41, 2
      %s43 = scalar_select %p42, 0, %s41
      %s44 = ssub.s32 %s31, %s43
      %s45 = ssub.s32 %s32, %s39
      %s46 = sor.u32 %s44, %s45
      %p47 = scmp.eq.s32.totalorder %s46, 0
      %s49 = sadd.s32 %s48, 1
      %s50 = scalar_select %p47, %s48, %s49
      %p53 = pneg %p47
      %p54 = scmp.eq.s32.totalorder %s24, 1
      %p55 = por %p53, %p54
      %p56 = scmp.ne.s32.totalorder %s48, %s51
      %p57 = scmp.eq.s32.totalorder %s24, 0
      %p58 = por %p56, %p57
      %p59 = scmp.ne.s32.totalorder %s48, %s51
      %p60 = scmp.eq.s32.totalorder %s29, 1
      %p61 = por %p59, %p60
      %p62 = scmp.ne.s32.totalorder %s51, %s52
      %p63 = scmp.eq.s32.totalorder %s29, 0
      %p64 = por %p62, %p63
      %p65 = scmp.ne.s32.totalorder %s51, %s52
      %p66 = scmp.eq.s32.totalorder %s30, 1
      %p67 = por %p65, %p66
      %p69 = scmp.ne.s32.totalorder %s52, %s68
      %p70 = scmp.eq.s32.totalorder %s30, 0
      %p71 = por %p69, %p70
      %s72 = ssub.s32 %s31, %s43
      %p73 = scmp.eq.s32.totalorder %s72, 0
      %s75 = sadd.s32 %s74, 1
      %s76 = scalar_select %p73, %s74, %s75
      %p79 = pneg %p73
      %p80 = scmp.eq.s32.totalorder %s24, 1
      %p81 = por %p79, %p80
      %p82 = scmp.ne.s32.totalorder %s74, %s77
      %p83 = scmp.eq.s32.totalorder %s24, 0
      %p84 = por %p82, %p83
      %p85 = scmp.ne.s32.totalorder %s74, %s77
      %p86 = scmp.eq.s32.totalorder %s29, 1
      %p87 = por %p85, %p86
      %p88 = scmp.ne.s32.totalorder %s77, %s78
      %p89 = scmp.eq.s32.totalorder %s29, 0
      %p90 = por %p88, %p89
      %p91 = scmp.ne.s32.totalorder %s77, %s78
      %p92 = scmp.eq.s32.totalorder %s30, 1
      %p93 = por %p91, %p92
      %p95 = scmp.ne.s32.totalorder %s78, %s94
      %p96 = scmp.eq.s32.totalorder %s30, 0
      %p97 = por %p95, %p96
      %s99 = sadd.s32 %s98, 1
      %p102 = scmp.eq.s32.totalorder %s24, 1
      %p103 = scmp.ne.s32.totalorder %s98, %s100
      %p104 = scmp.eq.s32.totalorder %s24, 0
      %p105 = por %p103, %p104
      %p106 = scmp.ne.s32.totalorder %s98, %s100
      %p107 = scmp.eq.s32.totalorder %s29, 1
      %p108 = por %p106, %p107
      %p109 = scmp.ne.s32.totalorder %s100, %s101
      %p110 = scmp.eq.s32.totalorder %s29, 0
      %p111 = por %p109, %p110
      %p112 = scmp.ne.s32.totalorder %s100, %s101
      %p113 = scmp.eq.s32.totalorder %s30, 1
      %p114 = por %p112, %p113
      %p116 = scmp.ne.s32.totalorder %s101, %s115
      %p117 = scmp.eq.s32.totalorder %s30, 0
      %p118 = por %p116, %p117
      %s120 = sadd.s32 %s119, 1
      %p123 = scmp.eq.s32.totalorder %s24, 1
      %p124 = scmp.ne.s32.totalorder %s119, %s121
      %p125 = scmp.eq.s32.totalorder %s24, 0
      %p126 = por %p124, %p125
      %p127 = scmp.ne.s32.totalorder %s119, %s121
      %p128 = scmp.eq.s32.totalorder %s29, 1
      %p129 = por %p127, %p128
      %p130 = scmp.ne.s32.totalorder %s121, %s122
      %p131 = scmp.eq.s32.totalorder %s29, 0
      %p132 = por %p130, %p131
      %p133 = scmp.ne.s32.totalorder %s121, %s122
      %p134 = scmp.eq.s32.totalorder %s30, 1
      %p135 = por %p133, %p134
      %p137 = scmp.ne.s32.totalorder %s122, %s136
      %p138 = scmp.eq.s32.totalorder %s30, 0
      %p139 = por %p137, %p138
      %s141 = sadd.s32 %s140, 1
      %p144 = scmp.eq.s32.totalorder %s24, 1
      %p145 = scmp.ne.s32.totalorder %s140, %s142
      %p146 = scmp.eq.s32.totalorder %s24, 0
      %p147 = por %p145, %p146
      %p148 = scmp.ne.s32.totalorder %s140, %s142
      %p149 = scmp.eq.s32.totalorder %s29, 1
      %p150 = por %p148, %p149
      %p151 = scmp.ne.s32.totalorder %s142, %s143
      %p152 = scmp.eq.s32.totalorder %s29, 0
      %p153 = por %p151, %p152
      %p154 = scmp.ne.s32.totalorder %s142, %s143
      %p155 = scmp.eq.s32.totalorder %s30, 1
      %p156 = por %p154, %p155
      %p158 = scmp.ne.s32.totalorder %s143, %s157
      %p159 = scmp.eq.s32.totalorder %s30, 0
      %p160 = por %p158, %p159
      %s162 = sadd.s32 %s161, 1
      %p165 = scmp.eq.s32.totalorder %s24, 1
      %p166 = scmp.ne.s32.totalorder %s161, %s163
      %p167 = scmp.eq.s32.totalorder %s24, 0
      %p168 = por %p166, %p167
      %p169 = scmp.ne.s32.totalorder %s161, %s163
      %p170 = scmp.eq.s32.totalorder %s29, 1
      %p171 = por %p169, %p170
      %p172 = scmp.ne.s32.totalorder %s163, %s164
      %p173 = scmp.eq.s32.totalorder %s29, 0
      %p174 = por %p172, %p173
      %p175 = scmp.ne.s32.totalorder %s163, %s164
      %p176 = scmp.eq.s32.totalorder %s30, 1
      %p177 = por %p175, %p176
      %p179 = scmp.ne.s32.totalorder %s164, %s178
      %p180 = scmp.eq.s32.totalorder %s30, 0
      %p181 = por %p179, %p180
      %s183 = sadd.s32 %s182, 1
      %p186 = scmp.eq.s32.totalorder %s24, 1
      %p187 = scmp.ne.s32.totalorder %s182, %s184
      %p188 = scmp.eq.s32.totalorder %s24, 0
      %p189 = por %p187, %p188
      %p190 = scmp.ne.s32.totalorder %s182, %s184
      %p191 = scmp.eq.s32.totalorder %s29, 1
      %p192 = por %p190, %p191
      %p193 = scmp.ne.s32.totalorder %s184, %s185
      %p194 = scmp.eq.s32.totalorder %s29, 0
      %p195 = por %p193, %p194
      %p196 = scmp.ne.s32.totalorder %s184, %s185
      %p197 = scmp.eq.s32.totalorder %s30, 1
      %p198 = por %p196, %p197
      %p200 = scmp.ne.s32.totalorder %s185, %s199
      %p201 = scmp.eq.s32.totalorder %s30, 0
      %p202 = por %p200, %p201
      %s204 = sadd.s32 %s203, 1
      %p207 = scmp.eq.s32.totalorder %s24, 1
      %p208 = scmp.ne.s32.totalorder %s203, %s205
      %p209 = scmp.eq.s32.totalorder %s24, 0
      %p210 = por %p208, %p209
      %p211 = scmp.ne.s32.totalorder %s203, %s205
      %p212 = scmp.eq.s32.totalorder %s29, 1
      %p213 = por %p211, %p212
      %p214 = scmp.ne.s32.totalorder %s205, %s206
      %p215 = scmp.eq.s32.totalorder %s29, 0
      %p216 = por %p214, %p215
      %p217 = scmp.ne.s32.totalorder %s205, %s206
      %p218 = scmp.eq.s32.totalorder %s30, 1
      %p219 = por %p217, %p218
      %p221 = scmp.ne.s32.totalorder %s206, %s220
      %p222 = scmp.eq.s32.totalorder %s30, 0
      %p223 = por %p221, %p222
      %s224 = ssub.s32 %s31, %s43
      %s225 = ssub.s32 %s32, %s39
      %s226 = sor.u32 %s224, %s225
      %p227 = scmp.eq.s32.totalorder %s226, 0
      %s229 = sadd.s32 %s228, 1
      %s230 = scalar_select %p227, %s228, %s229
      %p233 = pneg %p227
      %p234 = scmp.eq.s32.totalorder %s24, 1
      %p235 = por %p233, %p234
      %p236 = scmp.ne.s32.totalorder %s228, %s231
      %p237 = scmp.eq.s32.totalorder %s24, 0
      %p238 = por %p236, %p237
      %p239 = scmp.ne.s32.totalorder %s228, %s231
      %p240 = scmp.eq.s32.totalorder %s29, 1
      %p241 = por %p239, %p240
      %p242 = scmp.ne.s32.totalorder %s231, %s232
      %p243 = scmp.eq.s32.totalorder %s29, 0
      %p244 = por %p242, %p243
      %p245 = scmp.ne.s32.totalorder %s231, %s232
      %p246 = scmp.eq.s32.totalorder %s30, 1
      %p247 = por %p245, %p246
      %p249 = scmp.ne.s32.totalorder %s232, %s248
      %p250 = scmp.eq.s32.totalorder %s30, 0
      %p251 = por %p249, %p250
      %p252 = scmp.le.s32.totalorder 1, %s24
      %p253 = scmp.lt.s32.totalorder %s24, 3
      %p254 = pnand %p252, %p253
      %p255 = pneg %p254
      // Predicated region
      $region9: #{tpu_custom_call.1} parent=5 // pred_check
        _
      $region10: #{tpu_custom_call.1} parent=5 // pred_check_branch
        %257 = sbr.rel (%p254) target = $region12
      $region11: #{tpu_custom_call.1} parent=5 // pred_region
        %s258 = ssub.s32 %s24, 1
        // Predicated region
        $region13: #{tpu_custom_call.1} parent=11 // pred_check
          %p259 = pneg %p111
        $region14: #{tpu_custom_call.1} parent=11 // pred_check_branch
          %261 = sbr.rel (%p259) target = $region16
        $region15: #{tpu_custom_call.1} parent=11 // pred_region
          %263 = vsyncadd [#allocation6], 0
          %s264 = sshll.u32 %s2, 4
          %s265 = int_to_ptr.hbm [resolvable:$true] %s264
          %s266 = sshll.u32 [#allocation7], 4
          %s267 = int_to_ptr.vmem [resolvable:$true] %s266
          %272 = dma.hbm_to_vmem [thread:$0]  %s265, 2048, %s267, [#allocation6], 128, 128, 8
        $region16: #{tpu_custom_call.1} parent=11 // pred_fallthru
          _
        // Predicated region
        $region17: #{tpu_custom_call.1} parent=11 // pred_check
          %p273 = pneg %p132
        $region18: #{tpu_custom_call.1} parent=11 // pred_check_branch
          %275 = sbr.rel (%p273) target = $region20
        $region19: #{tpu_custom_call.1} parent=11 // pred_region
          _
        $region20: #{tpu_custom_call.1} parent=11 // pred_fallthru
          _
        // Predicated region
        $region21: #{tpu_custom_call.1} parent=11 // pred_check
          %p276 = pneg %p153
        $region22: #{tpu_custom_call.1} parent=11 // pred_check_branch
          %278 = sbr.rel (%p276) target = $region24
        $region23: #{tpu_custom_call.1} parent=11 // pred_region
          %280 = vsyncadd [#allocation9], 0
          %s281 = sshll.u32 %s4, 4
          %s282 = int_to_ptr.hbm [resolvable:$true] %s281
          %s283 = sshll.u32 [#allocation8], 4
          %s284 = int_to_ptr.vmem [resolvable:$true] %s283
          %289 = dma.hbm_to_vmem [thread:$0]  %s282, 4096, %s284, [#allocation9], 256, 256, 16
        $region24: #{tpu_custom_call.1} parent=11 // pred_fallthru
          _
        // Predicated region
        $region25: #{tpu_custom_call.1} parent=11 // pred_check
          %p290 = pneg %p174
        $region26: #{tpu_custom_call.1} parent=11 // pred_check_branch
          %292 = sbr.rel (%p290) target = $region28
        $region27: #{tpu_custom_call.1} parent=11 // pred_region
          _
        $region28: #{tpu_custom_call.1} parent=11 // pred_fallthru
          _
        // Predicated region
        $region29: #{tpu_custom_call.1} parent=11 // pred_check
          %p293 = pneg %p195
        $region30: #{tpu_custom_call.1} parent=11 // pred_check_branch
          %295 = sbr.rel (%p293) target = $region32
        $region31: #{tpu_custom_call.1} parent=11 // pred_region
          %297 = vsyncadd [#allocation9], 0
          %s298 = sshll.u32 %s6, 4
          %s299 = int_to_ptr.hbm [resolvable:$true] %s298
          %s300 = sshll.u32 [#allocation10], 4
          %s301 = int_to_ptr.vmem [resolvable:$true] %s300
          %306 = dma.hbm_to_vmem [thread:$0]  %s299, 2048, %s301, [#allocation9], 128, 128, 8
        $region32: #{tpu_custom_call.1} parent=11 // pred_fallthru
          _
        // Predicated region
        $region33: #{tpu_custom_call.1} parent=11 // pred_check
          %p307 = pneg %p216
        $region34: #{tpu_custom_call.1} parent=11 // pred_check_branch
          %309 = sbr.rel (%p307) target = $region36
        $region35: #{tpu_custom_call.1} parent=11 // pred_region
          _
        $region36: #{tpu_custom_call.1} parent=11 // pred_fallthru
          _
      $region12: #{tpu_custom_call.1} parent=5 // pred_fallthru
        _
      %p310 = scmp.lt.s32.totalorder %s24, 2
      // Predicated region
      $region37: #{tpu_custom_call.1} parent=5 // pred_check
        %p311 = pneg %p310
      $region38: #{tpu_custom_call.1} parent=5 // pred_check_branch
        %313 = sbr.rel (%p311) target = $region40
      $region39: #{tpu_custom_call.1} parent=5 // pred_region
        // Predicated region
        $region41: #{tpu_custom_call.1} parent=39 // pred_check
          %p314 = pneg %p58
        $region42: #{tpu_custom_call.1} parent=39 // pred_check_branch
          %316 = sbr.rel (%p314) target = $region44
        $region43: #{tpu_custom_call.1} parent=39 // pred_region
          %s317 = sand.u32 %s48, 1
          %s318 = scalar_lea.sflag [#allocation3], %s317
          %s319 = sand.u32 %s48, 1
          %s320 = smul.addr %s319, 16
          %s321 = scalar_lea.vmem [#allocation2], %s320
          %s322 = smul.u32 2, %s32
          %324 = vsyncadd %s318, 0
          %s325 = smul.addr %s31, 2
          %s326 = sadd.s32 %s322, %s325
          %s327 = smul.addr %s326, 8
          %s328 = scalar_lea.hbm %s0, %s327
          %s329 = sshll.u32 %s328, 4
          %s330 = int_to_ptr.hbm [resolvable:$true] %s329
          %s331 = sshll.u32 %s321, 4
          %s332 = int_to_ptr.vmem [resolvable:$true] %s331
          %337 = dma.hbm_to_vmem [thread:$0]  %s330, 256, %s332, %s318, 128, 128, 8
        $region44: #{tpu_custom_call.1} parent=39 // pred_fallthru
          _
        // Predicated region
        $region45: #{tpu_custom_call.1} parent=39 // pred_check
          %p338 = pneg %p84
        $region46: #{tpu_custom_call.1} parent=39 // pred_check_branch
          %340 = sbr.rel (%p338) target = $region48
        $region47: #{tpu_custom_call.1} parent=39 // pred_region
          %s341 = sand.u32 %s24, 1
          %s342 = scalar_lea.sflag [#allocation6], %s341
          %s343 = sand.u32 %s74, 1
          %s344 = smul.addr %s343, 16
          %s345 = scalar_lea.vmem [#allocation5], %s344
          %347 = vsyncadd %s342, 0
          %s348 = smul.addr %s31, 2
          %s349 = smul.addr %s348, 8
          %s350 = scalar_lea.hbm %s1, %s349
          %s351 = sshll.u32 %s350, 4
          %s352 = int_to_ptr.hbm [resolvable:$true] %s351
          %s353 = sshll.u32 %s345, 4
          %s354 = int_to_ptr.vmem [resolvable:$true] %s353
          %359 = dma.hbm_to_vmem [thread:$0]  %s352, 256, %s354, %s342, 128, 128, 8
        $region48: #{tpu_custom_call.1} parent=39 // pred_fallthru
          _
      $region40: #{tpu_custom_call.1} parent=5 // pred_fallthru
        _
      %p360 = scmp.le.s32.totalorder 1, %s24
      %p361 = scmp.lt.s32.totalorder %s24, 3
      %p362 = pnand %p360, %p361
      %p363 = pneg %p362
      // Predicated region
      $region49: #{tpu_custom_call.1} parent=5 // pred_check
        _
      $region50: #{tpu_custom_call.1} parent=5 // pred_check_branch
        %365 = sbr.rel (%p362) target = $region52
      $region51: #{tpu_custom_call.1} parent=5 // pred_region
        %s366 = ssub.s32 %s24, 1
        %s367 = sand.u32 %s51, 1
        %s368 = scalar_lea.sflag [#allocation3], %s367
        %s369 = sand.u32 %s51, 1
        %s370 = smul.addr %s369, 16
        %s371 = scalar_lea.vmem [#allocation2], %s370
        // Predicated region
        $region53: #{tpu_custom_call.1} parent=51 // pred_check
          %p372 = pneg %p64
        $region54: #{tpu_custom_call.1} parent=51 // pred_check_branch
          %374 = sbr.rel (%p372) target = $region56
        $region55: #{tpu_custom_call.1} parent=51 // pred_region
          %376 = dma.done %s368, 256
        $region56: #{tpu_custom_call.1} parent=51 // pred_fallthru
          _
        %s377 = sand.u32 %s29, 1
        %s378 = scalar_lea.sflag [#allocation6], %s377
        %s379 = sand.u32 %s77, 1
        %s380 = smul.addr %s379, 16
        %s381 = scalar_lea.vmem [#allocation5], %s380
        // Predicated region
        $region57: #{tpu_custom_call.1} parent=51 // pred_check
          %p382 = pneg %p90
        $region58: #{tpu_custom_call.1} parent=51 // pred_check_branch
          %384 = sbr.rel (%p382) target = $region60
        $region59: #{tpu_custom_call.1} parent=51 // pred_region
          %386 = dma.done %s378, 256
        $region60: #{tpu_custom_call.1} parent=51 // pred_fallthru
          _
        // Predicated region
        $region61: #{tpu_custom_call.1} parent=51 // pred_check
          %p387 = pneg %p111
        $region62: #{tpu_custom_call.1} parent=51 // pred_check_branch
          %389 = sbr.rel (%p387) target = $region64
        $region63: #{tpu_custom_call.1} parent=51 // pred_region
          %391 = dma.done [#allocation6], 2048
        $region64: #{tpu_custom_call.1} parent=51 // pred_fallthru
          _
        // Predicated region
        $region65: #{tpu_custom_call.1} parent=51 // pred_check
          %p392 = pneg %p153
        $region66: #{tpu_custom_call.1} parent=51 // pred_check_branch
          %394 = sbr.rel (%p392) target = $region68
        $region67: #{tpu_custom_call.1} parent=51 // pred_region
          %396 = dma.done [#allocation9], 4096
        $region68: #{tpu_custom_call.1} parent=51 // pred_fallthru
          _
        // Predicated region
        $region69: #{tpu_custom_call.1} parent=51 // pred_check
          %p397 = pneg %p195
        $region70: #{tpu_custom_call.1} parent=51 // pred_check_branch
          %399 = sbr.rel (%p397) target = $region72
        $region71: #{tpu_custom_call.1} parent=51 // pred_region
          %401 = dma.done [#allocation9], 2048
        $region72: #{tpu_custom_call.1} parent=51 // pred_fallthru
          _
        %s402 = sand.u32 %s51, 1
        %s403 = scalar_lea.sflag [#allocation3], %s402
        %s404 = sand.u32 %s51, 1
        %s405 = smul.addr %s404, 16
        %s406 = scalar_lea.vmem [#allocation2], %s405
        %p407 = pneg %p64
        %p408 = pneg %p61
        %s409 = sand.u32 %s29, 1
        %s410 = scalar_lea.sflag [#allocation6], %s409
        %s411 = sand.u32 %s77, 1
        %s412 = smul.addr %s411, 16
        %s413 = scalar_lea.vmem [#allocation5], %s412
        %p414 = pneg %p90
        %p415 = pneg %p87
        %p416 = pneg %p111
        %p417 = pneg %p108
        %p418 = pneg %p132
        %p419 = pneg %p129
        %p420 = pneg %p153
        %p421 = pneg %p150
        %p422 = pneg %p174
        %p423 = pneg %p171
        %p424 = pneg %p195
        %p425 = pneg %p192
        %p426 = pneg %p216
        %p427 = pneg %p213
        %p428 = pneg %p244
        %p429 = pneg %p241
        %s430 = sand.u32 %s231, 1
        %s431 = scalar_lea.sflag [#allocation4], %s430
        %s432 = sand.u32 %s231, 1
        %s433 = smul.addr %s432, 16
        %s434 = scalar_lea.vmem [#allocation11], %s433
        %s435 = smul.u32 2, %s34
        %s436 = smul.u32 2, %s34
        %v437 = vld [vmem:[%s371] sm:$0xff]
        %v438 = vld [vmem:[%s371 + $0x8] sm:$0xff]
        %v439 = vld [vmem:[%s381] sm:$0xff]
        %v440 = vld [vmem:[%s381 + $0x8] sm:$0xff]
        %v441 = vld [vmem:[#allocation7] sm:$0xff]
        %v442 = vld [vmem:[#allocation7 + $0x8] sm:$0xff]
        %v443 = vld [vmem:[#allocation7 + $0x10] sm:$0xff]
        %v444 = vld [vmem:[#allocation7 + $0x18] sm:$0xff]
        %v445 = vld [vmem:[#allocation7 + $0x20] sm:$0xff]
        %v446 = vld [vmem:[#allocation7 + $0x28] sm:$0xff]
        %v447 = vld [vmem:[#allocation7 + $0x30] sm:$0xff]
        %v448 = vld [vmem:[#allocation7 + $0x38] sm:$0xff]
        %v449 = vld [vmem:[#allocation7 + $0x40] sm:$0xff]
        %v450 = vld [vmem:[#allocation7 + $0x48] sm:$0xff]
        %v451 = vld [vmem:[#allocation7 + $0x50] sm:$0xff]
        %v452 = vld [vmem:[#allocation7 + $0x58] sm:$0xff]
        %v453 = vld [vmem:[#allocation7 + $0x60] sm:$0xff]
        %v454 = vld [vmem:[#allocation7 + $0x68] sm:$0xff]
        %v455 = vld [vmem:[#allocation7 + $0x70] sm:$0xff]
        %v456 = vld [vmem:[#allocation7 + $0x78] sm:$0xff]
        %v457 = vld [vmem:[%s3] sm:$0x1]
        %v459 = vperm.slane %v457, 0
        %461 = vmatpush.msra.mxu0 %v456
        %462 = vmatpush.msra.mxu0 %v455
        %463 = vmatpush.msra.mxu0 %v454
        %464 = vmatpush.msra.mxu0 %v453
        %465 = vmatpush.msra.mxu0 %v452
        %466 = vmatpush.msra.mxu0 %v451
        %467 = vmatpush.msra.mxu0 %v450
        %468 = vmatpush.msra.mxu0 %v449
        %469 = vmatpush.msra.mxu0 %v448
        %470 = vmatpush.msra.mxu0 %v447
        %471 = vmatpush.msra.mxu0 %v446
        %472 = vmatpush.msra.mxu0 %v445
        %473 = vmatpush.msra.mxu0 %v444
        %474 = vmatpush.msra.mxu0 %v443
        %475 = vmatpush.msra.mxu0 %v442
        %476 = vmatpush.msra.mxu0 %v441
        %477 = vmatmul.f32.gmra.mxu0 %v437
        %v478 = vpop.f32.mrf.mxu0
        %v479 = vadd.f32 %v459, %v478
        %480 = vmatmul.f32.gmra.mxu0 %v438
        %v481 = vpop.f32.mrf.mxu0
        %v482 = vadd.f32 %v459, %v481
        %483 = vdwg.mxu0
        %v484 = vmul.f32 %v479, 0.25
        %v485 = vmul.f32 %v482, 0.25
        %v486 = vld [vmem:[#allocation8] sm:$0xff]
        %v487 = vld [vmem:[#allocation8 + $0x8] sm:$0xff]
        %v488 = vld [vmem:[#allocation8 + $0x10] sm:$0xff]
        %v489 = vld [vmem:[#allocation8 + $0x18] sm:$0xff]
        %v490 = vld [vmem:[#allocation8 + $0x20] sm:$0xff]
        %v491 = vld [vmem:[#allocation8 + $0x28] sm:$0xff]
        %v492 = vld [vmem:[#allocation8 + $0x30] sm:$0xff]
        %v493 = vld [vmem:[#allocation8 + $0x38] sm:$0xff]
        %v494 = vld [vmem:[#allocation8 + $0x40] sm:$0xff]
        %v495 = vld [vmem:[#allocation8 + $0x48] sm:$0xff]
        %v496 = vld [vmem:[#allocation8 + $0x50] sm:$0xff]
        %v497 = vld [vmem:[#allocation8 + $0x58] sm:$0xff]
        %v498 = vld [vmem:[#allocation8 + $0x60] sm:$0xff]
        %v499 = vld [vmem:[#allocation8 + $0x68] sm:$0xff]
        %v500 = vld [vmem:[#allocation8 + $0x70] sm:$0xff]
        %v501 = vld [vmem:[#allocation8 + $0x78] sm:$0xff]
        %v502 = vld [vmem:[#allocation8 + $0x80] sm:$0xff]
        %v503 = vld [vmem:[#allocation8 + $0x88] sm:$0xff]
        %v504 = vld [vmem:[#allocation8 + $0x90] sm:$0xff]
        %v505 = vld [vmem:[#allocation8 + $0x98] sm:$0xff]
        %v506 = vld [vmem:[#allocation8 + $0xa0] sm:$0xff]
        %v507 = vld [vmem:[#allocation8 + $0xa8] sm:$0xff]
        %v508 = vld [vmem:[#allocation8 + $0xb0] sm:$0xff]
        %v509 = vld [vmem:[#allocation8 + $0xb8] sm:$0xff]
        %v510 = vld [vmem:[#allocation8 + $0xc0] sm:$0xff]
        %v511 = vld [vmem:[#allocation8 + $0xc8] sm:$0xff]
        %v512 = vld [vmem:[#allocation8 + $0xd0] sm:$0xff]
        %v513 = vld [vmem:[#allocation8 + $0xd8] sm:$0xff]
        %v514 = vld [vmem:[#allocation8 + $0xe0] sm:$0xff]
        %v515 = vld [vmem:[#allocation8 + $0xe8] sm:$0xff]
        %v516 = vld [vmem:[#allocation8 + $0xf0] sm:$0xff]
        %v517 = vld [vmem:[#allocation8 + $0xf8] sm:$0xff]
        %v518 = vld [vmem:[%s5] sm:$0x3]
        %v520 = vperm.slane %v518, 0
        %v521 = vperm.slane %v518, 1
        %524 = vmatpush.msra.mxu0 %v516
        %525 = vmatpush.msra.mxu0 %v514
        %526 = vmatpush.msra.mxu0 %v512
        %527 = vmatpush.msra.mxu0 %v510
        %528 = vmatpush.msra.mxu0 %v508
        %529 = vmatpush.msra.mxu0 %v506
        %530 = vmatpush.msra.mxu0 %v504
        %531 = vmatpush.msra.mxu0 %v502
        %532 = vmatpush.msra.mxu0 %v500
        %533 = vmatpush.msra.mxu0 %v498
        %534 = vmatpush.msra.mxu0 %v496
        %535 = vmatpush.msra.mxu0 %v494
        %536 = vmatpush.msra.mxu0 %v492
        %537 = vmatpush.msra.mxu0 %v490
        %538 = vmatpush.msra.mxu0 %v488
        %539 = vmatpush.msra.mxu0 %v486
        %540 = vmatmul.f32.gmra.mxu0 %v439
        %v541 = vpop.f32.mrf.mxu0
        %v542 = vadd.f32 %v520, %v541
        %543 = vmatmul.f32.gmra.mxu0 %v440
        %v544 = vpop.f32.mrf.mxu0
        %v545 = vadd.f32 %v520, %v544
        %546 = vdwg.mxu0
        %547 = vmatpush.msra.mxu0 %v517
        %548 = vmatpush.msra.mxu0 %v515
        %549 = vmatpush.msra.mxu0 %v513
        %550 = vmatpush.msra.mxu0 %v511
        %551 = vmatpush.msra.mxu0 %v509
        %552 = vmatpush.msra.mxu0 %v507
        %553 = vmatpush.msra.mxu0 %v505
        %554 = vmatpush.msra.mxu0 %v503
        %555 = vmatpush.msra.mxu0 %v501
        %556 = vmatpush.msra.mxu0 %v499
        %557 = vmatpush.msra.mxu0 %v497
        %558 = vmatpush.msra.mxu0 %v495
        %559 = vmatpush.msra.mxu0 %v493
        %560 = vmatpush.msra.mxu0 %v491
        %561 = vmatpush.msra.mxu0 %v489
        %562 = vmatpush.msra.mxu0 %v487
        %563 = vmatmul.f32.gmra.mxu0 %v439
        %v564 = vpop.f32.mrf.mxu0
        %v565 = vadd.f32 %v521, %v564
        %566 = vmatmul.f32.gmra.mxu0 %v440
        %v567 = vpop.f32.mrf.mxu0
        %v568 = vadd.f32 %v521, %v567
        %569 = vdwg.mxu0
        %572 = vrot.lane.b32.xlu0 %v484, 112
        %v573 = vpop.permute.xlu0 %572
        %574 = vrot.lane.b32.xlu0 %v485, 112
        %v575 = vpop.permute.xlu0 %574
        %578 = vrot.lane.b32.xlu0 %v484, 96
        %v579 = vpop.permute.xlu0 %578
        %580 = vrot.lane.b32.xlu0 %v485, 96
        %v581 = vpop.permute.xlu0 %580
        %584 = vrot.lane.b32.xlu0 %v484, 80
        %v585 = vpop.permute.xlu0 %584
        %586 = vrot.lane.b32.xlu0 %v485, 80
        %v587 = vpop.permute.xlu0 %586
        %590 = vrot.lane.b32.xlu0 %v484, 64
        %v591 = vpop.permute.xlu0 %590
        %592 = vrot.lane.b32.xlu0 %v485, 64
        %v593 = vpop.permute.xlu0 %592
        %596 = vrot.lane.b32.xlu0 %v484, 48
        %v597 = vpop.permute.xlu0 %596
        %598 = vrot.lane.b32.xlu0 %v485, 48
        %v599 = vpop.permute.xlu0 %598
        %602 = vrot.lane.b32.xlu0 %v484, 32
        %v603 = vpop.permute.xlu0 %602
        %604 = vrot.lane.b32.xlu0 %v485, 32
        %v605 = vpop.permute.xlu0 %604
        %608 = vrot.lane.b32.xlu0 %v484, 16
        %v609 = vpop.permute.xlu0 %608
        %610 = vrot.lane.b32.xlu0 %v485, 16
        %v611 = vpop.permute.xlu0 %610
        %v614 = vrot.slane %v579, 4
        %vm615 = vcmask 1047556
        %v616 = vsel %vm615, %v614, %v484
        %v617 = vrot.slane %v484, 4
        %v618 = vsel %vm615, %v579, %v617
        %v620 = vunpack.c.l.s4 1983009808
        %v621 = vunpack.c.0.s8 %v620
        %v622 = vperm.slane %v616, %v621
        %v624 = vunpack.c.l.s4 1983009808
        %v625 = vunpack.c.0.s8 %v624
        %v626 = vperm.slane %v618, %v625
        %v627 = vrot.slane %v585, 4
        %v628 = vsel %vm615, %v627, %v573
        %v629 = vrot.slane %v573, 4
        %v630 = vsel %vm615, %v585, %v629
        %v632 = vunpack.c.l.s4 1983009808
        %v633 = vunpack.c.0.s8 %v632
        %v634 = vperm.slane %v628, %v633
        %v636 = vunpack.c.l.s4 1983009808
        %v637 = vunpack.c.0.s8 %v636
        %v638 = vperm.slane %v630, %v637
        %v639 = vrot.slane %v603, 4
        %v640 = vsel %vm615, %v639, %v591
        %v641 = vrot.slane %v591, 4
        %v642 = vsel %vm615, %v603, %v641
        %v644 = vunpack.c.l.s4 1983009808
        %v645 = vunpack.c.0.s8 %v644
        %v646 = vperm.slane %v640, %v645
        %v648 = vunpack.c.l.s4 1983009808
        %v649 = vunpack.c.0.s8 %v648
        %v650 = vperm.slane %v642, %v649
        %v651 = vrot.slane %v609, 4
        %v652 = vsel %vm615, %v651, %v597
        %v653 = vrot.slane %v597, 4
        %v654 = vsel %vm615, %v609, %v653
        %v656 = vunpack.c.l.s4 1983009808
        %v657 = vunpack.c.0.s8 %v656
        %v658 = vperm.slane %v652, %v657
        %v660 = vunpack.c.l.s4 1983009808
        %v661 = vunpack.c.0.s8 %v660
        %v662 = vperm.slane %v654, %v661
        %v663 = vrot.slane %v634, 4
        %v664 = vsel %vm615, %v663, %v622
        %v665 = vrot.slane %v622, 4
        %v666 = vsel %vm615, %v634, %v665
        %v668 = vunpack.c.l.s4 1934713408
        %v669 = vunpack.c.0.s8 %v668
        %v670 = vperm.slane %v664, %v669
        %v672 = vunpack.c.l.s4 1934713408
        %v673 = vunpack.c.0.s8 %v672
        %v674 = vperm.slane %v666, %v673
        %v675 = vrot.slane %v638, 4
        %v676 = vsel %vm615, %v675, %v626
        %v677 = vrot.slane %v626, 4
        %v678 = vsel %vm615, %v638, %v677
        %v680 = vunpack.c.l.s4 1934713408
        %v681 = vunpack.c.0.s8 %v680
        %v682 = vperm.slane %v676, %v681
        %v684 = vunpack.c.l.s4 1934713408
        %v685 = vunpack.c.0.s8 %v684
        %v686 = vperm.slane %v678, %v685
        %v687 = vrot.slane %v658, 4
        %v688 = vsel %vm615, %v687, %v646
        %v689 = vrot.slane %v646, 4
        %v690 = vsel %vm615, %v658, %v689
        %v692 = vunpack.c.l.s4 1934713408
        %v693 = vunpack.c.0.s8 %v692
        %v694 = vperm.slane %v688, %v693
        %v696 = vunpack.c.l.s4 1934713408
        %v697 = vunpack.c.0.s8 %v696
        %v698 = vperm.slane %v690, %v697
        %v699 = vrot.slane %v662, 4
        %v700 = vsel %vm615, %v699, %v650
        %v701 = vrot.slane %v650, 4
        %v702 = vsel %vm615, %v662, %v701
        %v704 = vunpack.c.l.s4 1934713408
        %v705 = vunpack.c.0.s8 %v704
        %v706 = vperm.slane %v700, %v705
        %v708 = vunpack.c.l.s4 1934713408
        %v709 = vunpack.c.0.s8 %v708
        %v710 = vperm.slane %v702, %v709
        %v711 = vrot.slane %v694, 4
        %v712 = vsel %vm615, %v711, %v670
        %v713 = vrot.slane %v670, 4
        %v714 = vsel %vm615, %v694, %v713
        %v715 = vrot.slane %v698, 4
        %v716 = vsel %vm615, %v715, %v674
        %v717 = vrot.slane %v674, 4
        %v718 = vsel %vm615, %v698, %v717
        %v719 = vrot.slane %v706, 4
        %v720 = vsel %vm615, %v719, %v682
        %v721 = vrot.slane %v682, 4
        %v722 = vsel %vm615, %v706, %v721
        %v723 = vrot.slane %v710, 4
        %v724 = vsel %vm615, %v723, %v686
        %v725 = vrot.slane %v686, 4
        %v726 = vsel %vm615, %v710, %v725
        %v727 = vrot.slane %v581, 4
        %v728 = vsel %vm615, %v727, %v485
        %v729 = vrot.slane %v485, 4
        %v730 = vsel %vm615, %v581, %v729
        %v732 = vunpack.c.l.s4 1983009808
        %v733 = vunpack.c.0.s8 %v732
        %v734 = vperm.slane %v728, %v733
        %v736 = vunpack.c.l.s4 1983009808
        %v737 = vunpack.c.0.s8 %v736
        %v738 = vperm.slane %v730, %v737
        %v739 = vrot.slane %v587, 4
        %v740 = vsel %vm615, %v739, %v575
        %v741 = vrot.slane %v575, 4
        %v742 = vsel %vm615, %v587, %v741
        %v744 = vunpack.c.l.s4 1983009808
        %v745 = vunpack.c.0.s8 %v744
        %v746 = vperm.slane %v740, %v745
        %v748 = vunpack.c.l.s4 1983009808
        %v749 = vunpack.c.0.s8 %v748
        %v750 = vperm.slane %v742, %v749
        %v751 = vrot.slane %v605, 4
        %v752 = vsel %vm615, %v751, %v593
        %v753 = vrot.slane %v593, 4
        %v754 = vsel %vm615, %v605, %v753
        %v756 = vunpack.c.l.s4 1983009808
        %v757 = vunpack.c.0.s8 %v756
        %v758 = vperm.slane %v752, %v757
        %v760 = vunpack.c.l.s4 1983009808
        %v761 = vunpack.c.0.s8 %v760
        %v762 = vperm.slane %v754, %v761
        %v763 = vrot.slane %v611, 4
        %v764 = vsel %vm615, %v763, %v599
        %v765 = vrot.slane %v599, 4
        %v766 = vsel %vm615, %v611, %v765
        %v768 = vunpack.c.l.s4 1983009808
        %v769 = vunpack.c.0.s8 %v768
        %v770 = vperm.slane %v764, %v769
        %v772 = vunpack.c.l.s4 1983009808
        %v773 = vunpack.c.0.s8 %v772
        %v774 = vperm.slane %v766, %v773
        %v775 = vrot.slane %v746, 4
        %v776 = vsel %vm615, %v775, %v734
        %v777 = vrot.slane %v734, 4
        %v778 = vsel %vm615, %v746, %v777
        %v780 = vunpack.c.l.s4 1934713408
        %v781 = vunpack.c.0.s8 %v780
        %v782 = vperm.slane %v776, %v781
        %v784 = vunpack.c.l.s4 1934713408
        %v785 = vunpack.c.0.s8 %v784
        %v786 = vperm.slane %v778, %v785
        %v787 = vrot.slane %v750, 4
        %v788 = vsel %vm615, %v787, %v738
        %v789 = vrot.slane %v738, 4
        %v790 = vsel %vm615, %v750, %v789
        %v792 = vunpack.c.l.s4 1934713408
        %v793 = vunpack.c.0.s8 %v792
        %v794 = vperm.slane %v788, %v793
        %v796 = vunpack.c.l.s4 1934713408
        %v797 = vunpack.c.0.s8 %v796
        %v798 = vperm.slane %v790, %v797
        %v799 = vrot.slane %v770, 4
        %v800 = vsel %vm615, %v799, %v758
        %v801 = vrot.slane %v758, 4
        %v802 = vsel %vm615, %v770, %v801
        %v804 = vunpack.c.l.s4 1934713408
        %v805 = vunpack.c.0.s8 %v804
        %v806 = vperm.slane %v800, %v805
        %v808 = vunpack.c.l.s4 1934713408
        %v809 = vunpack.c.0.s8 %v808
        %v810 = vperm.slane %v802, %v809
        %v811 = vrot.slane %v774, 4
        %v812 = vsel %vm615, %v811, %v762
        %v813 = vrot.slane %v762, 4
        %v814 = vsel %vm615, %v774, %v813
        %v816 = vunpack.c.l.s4 1934713408
        %v817 = vunpack.c.0.s8 %v816
        %v818 = vperm.slane %v812, %v817
        %v820 = vunpack.c.l.s4 1934713408
        %v821 = vunpack.c.0.s8 %v820
        %v822 = vperm.slane %v814, %v821
        %v823 = vrot.slane %v806, 4
        %v824 = vsel %vm615, %v823, %v782
        %v825 = vrot.slane %v782, 4
        %v826 = vsel %vm615, %v806, %v825
        %v827 = vrot.slane %v810, 4
        %v828 = vsel %vm615, %v827, %v786
        %v829 = vrot.slane %v786, 4
        %v830 = vsel %vm615, %v810, %v829
        %v831 = vrot.slane %v818, 4
        %v832 = vsel %vm615, %v831, %v794
        %v833 = vrot.slane %v794, 4
        %v834 = vsel %vm615, %v818, %v833
        %v835 = vrot.slane %v822, 4
        %v836 = vsel %vm615, %v835, %v798
        %v837 = vrot.slane %v798, 4
        %v838 = vsel %vm615, %v822, %v837
        %v839 = vrot.slane %v716, 4
        %v840 = vsel %vm615, %v839, %v712
        %v841 = vrot.slane %v712, 4
        %v842 = vsel %vm615, %v716, %v841
        %v844 = vunpack.c.l.s4 1983009808
        %v845 = vunpack.c.0.s8 %v844
        %v846 = vperm.slane %v840, %v845
        %v848 = vunpack.c.l.s4 1983009808
        %v849 = vunpack.c.0.s8 %v848
        %v850 = vperm.slane %v842, %v849
        %v851 = vrot.slane %v718, 4
        %v852 = vsel %vm615, %v851, %v714
        %v853 = vrot.slane %v714, 4
        %v854 = vsel %vm615, %v718, %v853
        %v856 = vunpack.c.l.s4 1983009808
        %v857 = vunpack.c.0.s8 %v856
        %v858 = vperm.slane %v852, %v857
        %v860 = vunpack.c.l.s4 1983009808
        %v861 = vunpack.c.0.s8 %v860
        %v862 = vperm.slane %v854, %v861
        %v863 = vrot.slane %v724, 4
        %v864 = vsel %vm615, %v863, %v720
        %v865 = vrot.slane %v720, 4
        %v866 = vsel %vm615, %v724, %v865
        %v868 = vunpack.c.l.s4 1983009808
        %v869 = vunpack.c.0.s8 %v868
        %v870 = vperm.slane %v864, %v869
        %v872 = vunpack.c.l.s4 1983009808
        %v873 = vunpack.c.0.s8 %v872
        %v874 = vperm.slane %v866, %v873
        %v875 = vrot.slane %v726, 4
        %v876 = vsel %vm615, %v875, %v722
        %v877 = vrot.slane %v722, 4
        %v878 = vsel %vm615, %v726, %v877
        %v880 = vunpack.c.l.s4 1983009808
        %v881 = vunpack.c.0.s8 %v880
        %v882 = vperm.slane %v876, %v881
        %v884 = vunpack.c.l.s4 1983009808
        %v885 = vunpack.c.0.s8 %v884
        %v886 = vperm.slane %v878, %v885
        %v887 = vrot.slane %v858, 4
        %v888 = vsel %vm615, %v887, %v846
        %v889 = vrot.slane %v846, 4
        %v890 = vsel %vm615, %v858, %v889
        %v892 = vunpack.c.l.s4 1934713408
        %v893 = vunpack.c.0.s8 %v892
        %v894 = vperm.slane %v888, %v893
        %v896 = vunpack.c.l.s4 1934713408
        %v897 = vunpack.c.0.s8 %v896
        %v898 = vperm.slane %v890, %v897
        %v899 = vrot.slane %v862, 4
        %v900 = vsel %vm615, %v899, %v850
        %v901 = vrot.slane %v850, 4
        %v902 = vsel %vm615, %v862, %v901
        %v904 = vunpack.c.l.s4 1934713408
        %v905 = vunpack.c.0.s8 %v904
        %v906 = vperm.slane %v900, %v905
        %v908 = vunpack.c.l.s4 1934713408
        %v909 = vunpack.c.0.s8 %v908
        %v910 = vperm.slane %v902, %v909
        %v911 = vrot.slane %v882, 4
        %v912 = vsel %vm615, %v911, %v870
        %v913 = vrot.slane %v870, 4
        %v914 = vsel %vm615, %v882, %v913
        %v916 = vunpack.c.l.s4 1934713408
        %v917 = vunpack.c.0.s8 %v916
        %v918 = vperm.slane %v912, %v917
        %v920 = vunpack.c.l.s4 1934713408
        %v921 = vunpack.c.0.s8 %v920
        %v922 = vperm.slane %v914, %v921
        %v923 = vrot.slane %v886, 4
        %v924 = vsel %vm615, %v923, %v874
        %v925 = vrot.slane %v874, 4
        %v926 = vsel %vm615, %v886, %v925
        %v928 = vunpack.c.l.s4 1934713408
        %v929 = vunpack.c.0.s8 %v928
        %v930 = vperm.slane %v924, %v929
        %v932 = vunpack.c.l.s4 1934713408
        %v933 = vunpack.c.0.s8 %v932
        %v934 = vperm.slane %v926, %v933
        %v935 = vrot.slane %v918, 4
        %v936 = vsel %vm615, %v935, %v894
        %v937 = vrot.slane %v894, 4
        %v938 = vsel %vm615, %v918, %v937
        %v939 = vrot.slane %v922, 4
        %v940 = vsel %vm615, %v939, %v898
        %v941 = vrot.slane %v898, 4
        %v942 = vsel %vm615, %v922, %v941
        %v943 = vrot.slane %v930, 4
        %v944 = vsel %vm615, %v943, %v906
        %v945 = vrot.slane %v906, 4
        %v946 = vsel %vm615, %v930, %v945
        %v947 = vrot.slane %v934, 4
        %v948 = vsel %vm615, %v947, %v910
        %v949 = vrot.slane %v910, 4
        %v950 = vsel %vm615, %v934, %v949
        %v951 = vrot.slane %v828, 4
        %v952 = vsel %vm615, %v951, %v824
        %v953 = vrot.slane %v824, 4
        %v954 = vsel %vm615, %v828, %v953
        %v956 = vunpack.c.l.s4 1983009808
        %v957 = vunpack.c.0.s8 %v956
        %v958 = vperm.slane %v952, %v957
        %v960 = vunpack.c.l.s4 1983009808
        %v961 = vunpack.c.0.s8 %v960
        %v962 = vperm.slane %v954, %v961
        %v963 = vrot.slane %v830, 4
        %v964 = vsel %vm615, %v963, %v826
        %v965 = vrot.slane %v826, 4
        %v966 = vsel %vm615, %v830, %v965
        %v968 = vunpack.c.l.s4 1983009808
        %v969 = vunpack.c.0.s8 %v968
        %v970 = vperm.slane %v964, %v969
        %v972 = vunpack.c.l.s4 1983009808
        %v973 = vunpack.c.0.s8 %v972
        %v974 = vperm.slane %v966, %v973
        %v975 = vrot.slane %v836, 4
        %v976 = vsel %vm615, %v975, %v832
        %v977 = vrot.slane %v832, 4
        %v978 = vsel %vm615, %v836, %v977
        %v980 = vunpack.c.l.s4 1983009808
        %v981 = vunpack.c.0.s8 %v980
        %v982 = vperm.slane %v976, %v981
        %v984 = vunpack.c.l.s4 1983009808
        %v985 = vunpack.c.0.s8 %v984
        %v986 = vperm.slane %v978, %v985
        %v987 = vrot.slane %v838, 4
        %v988 = vsel %vm615, %v987, %v834
        %v989 = vrot.slane %v834, 4
        %v990 = vsel %vm615, %v838, %v989
        %v992 = vunpack.c.l.s4 1983009808
        %v993 = vunpack.c.0.s8 %v992
        %v994 = vperm.slane %v988, %v993
        %v996 = vunpack.c.l.s4 1983009808
        %v997 = vunpack.c.0.s8 %v996
        %v998 = vperm.slane %v990, %v997
        %v999 = vrot.slane %v970, 4
        %v1000 = vsel %vm615, %v999, %v958
        %v1001 = vrot.slane %v958, 4
        %v1002 = vsel %vm615, %v970, %v1001
        %v1004 = vunpack.c.l.s4 1934713408
        %v1005 = vunpack.c.0.s8 %v1004
        %v1006 = vperm.slane %v1000, %v1005
        %v1008 = vunpack.c.l.s4 1934713408
        %v1009 = vunpack.c.0.s8 %v1008
        %v1010 = vperm.slane %v1002, %v1009
        %v1011 = vrot.slane %v974, 4
        %v1012 = vsel %vm615, %v1011, %v962
        %v1013 = vrot.slane %v962, 4
        %v1014 = vsel %vm615, %v974, %v1013
        %v1016 = vunpack.c.l.s4 1934713408
        %v1017 = vunpack.c.0.s8 %v1016
        %v1018 = vperm.slane %v1012, %v1017
        %v1020 = vunpack.c.l.s4 1934713408
        %v1021 = vunpack.c.0.s8 %v1020
        %v1022 = vperm.slane %v1014, %v1021
        %v1023 = vrot.slane %v994, 4
        %v1024 = vsel %vm615, %v1023, %v982
        %v1025 = vrot.slane %v982, 4
        %v1026 = vsel %vm615, %v994, %v1025
        %v1028 = vunpack.c.l.s4 1934713408
        %v1029 = vunpack.c.0.s8 %v1028
        %v1030 = vperm.slane %v1024, %v1029
        %v1032 = vunpack.c.l.s4 1934713408
        %v1033 = vunpack.c.0.s8 %v1032
        %v1034 = vperm.slane %v1026, %v1033
        %v1035 = vrot.slane %v998, 4
        %v1036 = vsel %vm615, %v1035, %v986
        %v1037 = vrot.slane %v986, 4
        %v1038 = vsel %vm615, %v998, %v1037
        %v1040 = vunpack.c.l.s4 1934713408
        %v1041 = vunpack.c.0.s8 %v1040
        %v1042 = vperm.slane %v1036, %v1041
        %v1044 = vunpack.c.l.s4 1934713408
        %v1045 = vunpack.c.0.s8 %v1044
        %v1046 = vperm.slane %v1038, %v1045
        %v1047 = vrot.slane %v1030, 4
        %v1048 = vsel %vm615, %v1047, %v1006
        %v1049 = vrot.slane %v1006, 4
        %v1050 = vsel %vm615, %v1030, %v1049
        %v1051 = vrot.slane %v1034, 4
        %v1052 = vsel %vm615, %v1051, %v1010
        %v1053 = vrot.slane %v1010, 4
        %v1054 = vsel %vm615, %v1034, %v1053
        %v1055 = vrot.slane %v1042, 4
        %v1056 = vsel %vm615, %v1055, %v1018
        %v1057 = vrot.slane %v1018, 4
        %v1058 = vsel %vm615, %v1042, %v1057
        %v1059 = vrot.slane %v1046, 4
        %v1060 = vsel %vm615, %v1059, %v1022
        %v1061 = vrot.slane %v1022, 4
        %v1062 = vsel %vm615, %v1046, %v1061
        %1065 = vrot.lane.b32.xlu0 %v542, 112
        %v1066 = vpop.permute.xlu0 %1065
        %1067 = vrot.lane.b32.xlu0 %v545, 112
        %v1068 = vpop.permute.xlu0 %1067
        %1071 = vrot.lane.b32.xlu0 %v542, 96
        %v1072 = vpop.permute.xlu0 %1071
        %1073 = vrot.lane.b32.xlu0 %v545, 96
        %v1074 = vpop.permute.xlu0 %1073
        %1077 = vrot.lane.b32.xlu0 %v542, 80
        %v1078 = vpop.permute.xlu0 %1077
        %1079 = vrot.lane.b32.xlu0 %v545, 80
        %v1080 = vpop.permute.xlu0 %1079
        %1083 = vrot.lane.b32.xlu0 %v542, 64
        %v1084 = vpop.permute.xlu0 %1083
        %1085 = vrot.lane.b32.xlu0 %v545, 64
        %v1086 = vpop.permute.xlu0 %1085
        %1089 = vrot.lane.b32.xlu0 %v542, 48
        %v1090 = vpop.permute.xlu0 %1089
        %1091 = vrot.lane.b32.xlu0 %v545, 48
        %v1092 = vpop.permute.xlu0 %1091
        %1095 = vrot.lane.b32.xlu0 %v542, 32
        %v1096 = vpop.permute.xlu0 %1095
        %1097 = vrot.lane.b32.xlu0 %v545, 32
        %v1098 = vpop.permute.xlu0 %1097
        %1101 = vrot.lane.b32.xlu0 %v542, 16
        %v1102 = vpop.permute.xlu0 %1101
        %1103 = vrot.lane.b32.xlu0 %v545, 16
        %v1104 = vpop.permute.xlu0 %1103
        %v1107 = vrot.slane %v1072, 4
        %v1108 = vsel %vm615, %v1107, %v542
        %v1109 = vrot.slane %v542, 4
        %v1110 = vsel %vm615, %v1072, %v1109
        %v1112 = vunpack.c.l.s4 1983009808
        %v1113 = vunpack.c.0.s8 %v1112
        %v1114 = vperm.slane %v1108, %v1113
        %v1116 = vunpack.c.l.s4 1983009808
        %v1117 = vunpack.c.0.s8 %v1116
        %v1118 = vperm.slane %v1110, %v1117
        %v1119 = vrot.slane %v1078, 4
        %v1120 = vsel %vm615, %v1119, %v1066
        %v1121 = vrot.slane %v1066, 4
        %v1122 = vsel %vm615, %v1078, %v1121
        %v1124 = vunpack.c.l.s4 1983009808
        %v1125 = vunpack.c.0.s8 %v1124
        %v1126 = vperm.slane %v1120, %v1125
        %v1128 = vunpack.c.l.s4 1983009808
        %v1129 = vunpack.c.0.s8 %v1128
        %v1130 = vperm.slane %v1122, %v1129
        %v1131 = vrot.slane %v1096, 4
        %v1132 = vsel %vm615, %v1131, %v1084
        %v1133 = vrot.slane %v1084, 4
        %v1134 = vsel %vm615, %v1096, %v1133
        %v1136 = vunpack.c.l.s4 1983009808
        %v1137 = vunpack.c.0.s8 %v1136
        %v1138 = vperm.slane %v1132, %v1137
        %v1140 = vunpack.c.l.s4 1983009808
        %v1141 = vunpack.c.0.s8 %v1140
        %v1142 = vperm.slane %v1134, %v1141
        %v1143 = vrot.slane %v1102, 4
        %v1144 = vsel %vm615, %v1143, %v1090
        %v1145 = vrot.slane %v1090, 4
        %v1146 = vsel %vm615, %v1102, %v1145
        %v1148 = vunpack.c.l.s4 1983009808
        %v1149 = vunpack.c.0.s8 %v1148
        %v1150 = vperm.slane %v1144, %v1149
        %v1152 = vunpack.c.l.s4 1983009808
        %v1153 = vunpack.c.0.s8 %v1152
        %v1154 = vperm.slane %v1146, %v1153
        %v1155 = vrot.slane %v1126, 4
        %v1156 = vsel %vm615, %v1155, %v1114
        %v1157 = vrot.slane %v1114, 4
        %v1158 = vsel %vm615, %v1126, %v1157
        %v1160 = vunpack.c.l.s4 1934713408
        %v1161 = vunpack.c.0.s8 %v1160
        %v1162 = vperm.slane %v1156, %v1161
        %v1164 = vunpack.c.l.s4 1934713408
        %v1165 = vunpack.c.0.s8 %v1164
        %v1166 = vperm.slane %v1158, %v1165
        %v1167 = vrot.slane %v1130, 4
        %v1168 = vsel %vm615, %v1167, %v1118
        %v1169 = vrot.slane %v1118, 4
        %v1170 = vsel %vm615, %v1130, %v1169
        %v1172 = vunpack.c.l.s4 1934713408
        %v1173 = vunpack.c.0.s8 %v1172
        %v1174 = vperm.slane %v1168, %v1173
        %v1176 = vunpack.c.l.s4 1934713408
        %v1177 = vunpack.c.0.s8 %v1176
        %v1178 = vperm.slane %v1170, %v1177
        %v1179 = vrot.slane %v1150, 4
        %v1180 = vsel %vm615, %v1179, %v1138
        %v1181 = vrot.slane %v1138, 4
        %v1182 = vsel %vm615, %v1150, %v1181
        %v1184 = vunpack.c.l.s4 1934713408
        %v1185 = vunpack.c.0.s8 %v1184
        %v1186 = vperm.slane %v1180, %v1185
        %v1188 = vunpack.c.l.s4 1934713408
        %v1189 = vunpack.c.0.s8 %v1188
        %v1190 = vperm.slane %v1182, %v1189
        %v1191 = vrot.slane %v1154, 4
        %v1192 = vsel %vm615, %v1191, %v1142
        %v1193 = vrot.slane %v1142, 4
        %v1194 = vsel %vm615, %v1154, %v1193
        %v1196 = vunpack.c.l.s4 1934713408
        %v1197 = vunpack.c.0.s8 %v1196
        %v1198 = vperm.slane %v1192, %v1197
        %v1200 = vunpack.c.l.s4 1934713408
        %v1201 = vunpack.c.0.s8 %v1200
        %v1202 = vperm.slane %v1194, %v1201
        %v1203 = vrot.slane %v1186, 4
        %v1204 = vsel %vm615, %v1203, %v1162
        %v1205 = vrot.slane %v1162, 4
        %v1206 = vsel %vm615, %v1186, %v1205
        %v1207 = vrot.slane %v1190, 4
        %v1208 = vsel %vm615, %v1207, %v1166
        %v1209 = vrot.slane %v1166, 4
        %v1210 = vsel %vm615, %v1190, %v1209
        %v1211 = vrot.slane %v1198, 4
        %v1212 = vsel %vm615, %v1211, %v1174
        %v1213 = vrot.slane %v1174, 4
        %v1214 = vsel %vm615, %v1198, %v1213
        %v1215 = vrot.slane %v1202, 4
        %v1216 = vsel %vm615, %v1215, %v1178
        %v1217 = vrot.slane %v1178, 4
        %v1218 = vsel %vm615, %v1202, %v1217
        %v1219 = vrot.slane %v1074, 4
        %v1220 = vsel %vm615, %v1219, %v545
        %v1221 = vrot.slane %v545, 4
        %v1222 = vsel %vm615, %v1074, %v1221
        %v1224 = vunpack.c.l.s4 1983009808
        %v1225 = vunpack.c.0.s8 %v1224
        %v1226 = vperm.slane %v1220, %v1225
        %v1228 = vunpack.c.l.s4 1983009808
        %v1229 = vunpack.c.0.s8 %v1228
        %v1230 = vperm.slane %v1222, %v1229
        %v1231 = vrot.slane %v1080, 4
        %v1232 = vsel %vm615, %v1231, %v1068
        %v1233 = vrot.slane %v1068, 4
        %v1234 = vsel %vm615, %v1080, %v1233
        %v1236 = vunpack.c.l.s4 1983009808
        %v1237 = vunpack.c.0.s8 %v1236
        %v1238 = vperm.slane %v1232, %v1237
        %v1240 = vunpack.c.l.s4 1983009808
        %v1241 = vunpack.c.0.s8 %v1240
        %v1242 = vperm.slane %v1234, %v1241
        %v1243 = vrot.slane %v1098, 4
        %v1244 = vsel %vm615, %v1243, %v1086
        %v1245 = vrot.slane %v1086, 4
        %v1246 = vsel %vm615, %v1098, %v1245
        %v1248 = vunpack.c.l.s4 1983009808
        %v1249 = vunpack.c.0.s8 %v1248
        %v1250 = vperm.slane %v1244, %v1249
        %v1252 = vunpack.c.l.s4 1983009808
        %v1253 = vunpack.c.0.s8 %v1252
        %v1254 = vperm.slane %v1246, %v1253
        %v1255 = vrot.slane %v1104, 4
        %v1256 = vsel %vm615, %v1255, %v1092
        %v1257 = vrot.slane %v1092, 4
        %v1258 = vsel %vm615, %v1104, %v1257
        %v1260 = vunpack.c.l.s4 1983009808
        %v1261 = vunpack.c.0.s8 %v1260
        %v1262 = vperm.slane %v1256, %v1261
        %v1264 = vunpack.c.l.s4 1983009808
        %v1265 = vunpack.c.0.s8 %v1264
        %v1266 = vperm.slane %v1258, %v1265
        %v1267 = vrot.slane %v1238, 4
        %v1268 = vsel %vm615, %v1267, %v1226
        %v1269 = vrot.slane %v1226, 4
        %v1270 = vsel %vm615, %v1238, %v1269
        %v1272 = vunpack.c.l.s4 1934713408
        %v1273 = vunpack.c.0.s8 %v1272
        %v1274 = vperm.slane %v1268, %v1273
        %v1276 = vunpack.c.l.s4 1934713408
        %v1277 = vunpack.c.0.s8 %v1276
        %v1278 = vperm.slane %v1270, %v1277
        %v1279 = vrot.slane %v1242, 4
        %v1280 = vsel %vm615, %v1279, %v1230
        %v1281 = vrot.slane %v1230, 4
        %v1282 = vsel %vm615, %v1242, %v1281
        %v1284 = vunpack.c.l.s4 1934713408
        %v1285 = vunpack.c.0.s8 %v1284
        %v1286 = vperm.slane %v1280, %v1285
        %v1288 = vunpack.c.l.s4 1934713408
        %v1289 = vunpack.c.0.s8 %v1288
        %v1290 = vperm.slane %v1282, %v1289
        %v1291 = vrot.slane %v1262, 4
        %v1292 = vsel %vm615, %v1291, %v1250
        %v1293 = vrot.slane %v1250, 4
        %v1294 = vsel %vm615, %v1262, %v1293
        %v1296 = vunpack.c.l.s4 1934713408
        %v1297 = vunpack.c.0.s8 %v1296
        %v1298 = vperm.slane %v1292, %v1297
        %v1300 = vunpack.c.l.s4 1934713408
        %v1301 = vunpack.c.0.s8 %v1300
        %v1302 = vperm.slane %v1294, %v1301
        %v1303 = vrot.slane %v1266, 4
        %v1304 = vsel %vm615, %v1303, %v1254
        %v1305 = vrot.slane %v1254, 4
        %v1306 = vsel %vm615, %v1266, %v1305
        %v1308 = vunpack.c.l.s4 1934713408
        %v1309 = vunpack.c.0.s8 %v1308
        %v1310 = vperm.slane %v1304, %v1309
        %v1312 = vunpack.c.l.s4 1934713408
        %v1313 = vunpack.c.0.s8 %v1312
        %v1314 = vperm.slane %v1306, %v1313
        %v1315 = vrot.slane %v1298, 4
        %v1316 = vsel %vm615, %v1315, %v1274
        %v1317 = vrot.slane %v1274, 4
        %v1318 = vsel %vm615, %v1298, %v1317
        %v1319 = vrot.slane %v1302, 4
        %v1320 = vsel %vm615, %v1319, %v1278
        %v1321 = vrot.slane %v1278, 4
        %v1322 = vsel %vm615, %v1302, %v1321
        %v1323 = vrot.slane %v1310, 4
        %v1324 = vsel %vm615, %v1323, %v1286
        %v1325 = vrot.slane %v1286, 4
        %v1326 = vsel %vm615, %v1310, %v1325
        %v1327 = vrot.slane %v1314, 4
        %v1328 = vsel %vm615, %v1327, %v1290
        %v1329 = vrot.slane %v1290, 4
        %v1330 = vsel %vm615, %v1314, %v1329
        %v1331 = vrot.slane %v1208, 4
        %v1332 = vsel %vm615, %v1331, %v1204
        %v1333 = vrot.slane %v1204, 4
        %v1334 = vsel %vm615, %v1208, %v1333
        %v1336 = vunpack.c.l.s4 1983009808
        %v1337 = vunpack.c.0.s8 %v1336
        %v1338 = vperm.slane %v1332, %v1337
        %v1340 = vunpack.c.l.s4 1983009808
        %v1341 = vunpack.c.0.s8 %v1340
        %v1342 = vperm.slane %v1334, %v1341
        %v1343 = vrot.slane %v1210, 4
        %v1344 = vsel %vm615, %v1343, %v1206
        %v1345 = vrot.slane %v1206, 4
        %v1346 = vsel %vm615, %v1210, %v1345
        %v1348 = vunpack.c.l.s4 1983009808
        %v1349 = vunpack.c.0.s8 %v1348
        %v1350 = vperm.slane %v1344, %v1349
        %v1352 = vunpack.c.l.s4 1983009808
        %v1353 = vunpack.c.0.s8 %v1352
        %v1354 = vperm.slane %v1346, %v1353
        %v1355 = vrot.slane %v1216, 4
        %v1356 = vsel %vm615, %v1355, %v1212
        %v1357 = vrot.slane %v1212, 4
        %v1358 = vsel %vm615, %v1216, %v1357
        %v1360 = vunpack.c.l.s4 1983009808
        %v1361 = vunpack.c.0.s8 %v1360
        %v1362 = vperm.slane %v1356, %v1361
        %v1364 = vunpack.c.l.s4 1983009808
        %v1365 = vunpack.c.0.s8 %v1364
        %v1366 = vperm.slane %v1358, %v1365
        %v1367 = vrot.slane %v1218, 4
        %v1368 = vsel %vm615, %v1367, %v1214
        %v1369 = vrot.slane %v1214, 4
        %v1370 = vsel %vm615, %v1218, %v1369
        %v1372 = vunpack.c.l.s4 1983009808
        %v1373 = vunpack.c.0.s8 %v1372
        %v1374 = vperm.slane %v1368, %v1373
        %v1376 = vunpack.c.l.s4 1983009808
        %v1377 = vunpack.c.0.s8 %v1376
        %v1378 = vperm.slane %v1370, %v1377
        %v1379 = vrot.slane %v1350, 4
        %v1380 = vsel %vm615, %v1379, %v1338
        %v1381 = vrot.slane %v1338, 4
        %v1382 = vsel %vm615, %v1350, %v1381
        %v1384 = vunpack.c.l.s4 1934713408
        %v1385 = vunpack.c.0.s8 %v1384
        %v1386 = vperm.slane %v1380, %v1385
        %v1388 = vunpack.c.l.s4 1934713408
        %v1389 = vunpack.c.0.s8 %v1388
        %v1390 = vperm.slane %v1382, %v1389
        %v1391 = vrot.slane %v1354, 4
        %v1392 = vsel %vm615, %v1391, %v1342
        %v1393 = vrot.slane %v1342, 4
        %v1394 = vsel %vm615, %v1354, %v1393
        %v1396 = vunpack.c.l.s4 1934713408
        %v1397 = vunpack.c.0.s8 %v1396
        %v1398 = vperm.slane %v1392, %v1397
        %v1400 = vunpack.c.l.s4 1934713408
        %v1401 = vunpack.c.0.s8 %v1400
        %v1402 = vperm.slane %v1394, %v1401
        %v1403 = vrot.slane %v1374, 4
        %v1404 = vsel %vm615, %v1403, %v1362
        %v1405 = vrot.slane %v1362, 4
        %v1406 = vsel %vm615, %v1374, %v1405
        %v1408 = vunpack.c.l.s4 1934713408
        %v1409 = vunpack.c.0.s8 %v1408
        %v1410 = vperm.slane %v1404, %v1409
        %v1412 = vunpack.c.l.s4 1934713408
        %v1413 = vunpack.c.0.s8 %v1412
        %v1414 = vperm.slane %v1406, %v1413
        %v1415 = vrot.slane %v1378, 4
        %v1416 = vsel %vm615, %v1415, %v1366
        %v1417 = vrot.slane %v1366, 4
        %v1418 = vsel %vm615, %v1378, %v1417
        %v1420 = vunpack.c.l.s4 1934713408
        %v1421 = vunpack.c.0.s8 %v1420
        %v1422 = vperm.slane %v1416, %v1421
        %v1424 = vunpack.c.l.s4 1934713408
        %v1425 = vunpack.c.0.s8 %v1424
        %v1426 = vperm.slane %v1418, %v1425
        %v1427 = vrot.slane %v1410, 4
        %v1428 = vsel %vm615, %v1427, %v1386
        %v1429 = vrot.slane %v1386, 4
        %v1430 = vsel %vm615, %v1410, %v1429
        %v1431 = vrot.slane %v1414, 4
        %v1432 = vsel %vm615, %v1431, %v1390
        %v1433 = vrot.slane %v1390, 4
        %v1434 = vsel %vm615, %v1414, %v1433
        %v1435 = vrot.slane %v1422, 4
        %v1436 = vsel %vm615, %v1435, %v1398
        %v1437 = vrot.slane %v1398, 4
        %v1438 = vsel %vm615, %v1422, %v1437
        %v1439 = vrot.slane %v1426, 4
        %v1440 = vsel %vm615, %v1439, %v1402
        %v1441 = vrot.slane %v1402, 4
        %v1442 = vsel %vm615, %v1426, %v1441
        %v1443 = vrot.slane %v1320, 4
        %v1444 = vsel %vm615, %v1443, %v1316
        %v1445 = vrot.slane %v1316, 4
        %v1446 = vsel %vm615, %v1320, %v1445
        %v1448 = vunpack.c.l.s4 1983009808
        %v1449 = vunpack.c.0.s8 %v1448
        %v1450 = vperm.slane %v1444, %v1449
        %v1452 = vunpack.c.l.s4 1983009808
        %v1453 = vunpack.c.0.s8 %v1452
        %v1454 = vperm.slane %v1446, %v1453
        %v1455 = vrot.slane %v1322, 4
        %v1456 = vsel %vm615, %v1455, %v1318
        %v1457 = vrot.slane %v1318, 4
        %v1458 = vsel %vm615, %v1322, %v1457
        %v1460 = vunpack.c.l.s4 1983009808
        %v1461 = vunpack.c.0.s8 %v1460
        %v1462 = vperm.slane %v1456, %v1461
        %v1464 = vunpack.c.l.s4 1983009808
        %v1465 = vunpack.c.0.s8 %v1464
        %v1466 = vperm.slane %v1458, %v1465
        %v1467 = vrot.slane %v1328, 4
        %v1468 = vsel %vm615, %v1467, %v1324
        %v1469 = vrot.slane %v1324, 4
        %v1470 = vsel %vm615, %v1328, %v1469
        %v1472 = vunpack.c.l.s4 1983009808
        %v1473 = vunpack.c.0.s8 %v1472
        %v1474 = vperm.slane %v1468, %v1473
        %v1476 = vunpack.c.l.s4 1983009808
        %v1477 = vunpack.c.0.s8 %v1476
        %v1478 = vperm.slane %v1470, %v1477
        %v1479 = vrot.slane %v1330, 4
        %v1480 = vsel %vm615, %v1479, %v1326
        %v1481 = vrot.slane %v1326, 4
        %v1482 = vsel %vm615, %v1330, %v1481
        %v1484 = vunpack.c.l.s4 1983009808
        %v1485 = vunpack.c.0.s8 %v1484
        %v1486 = vperm.slane %v1480, %v1485
        %v1488 = vunpack.c.l.s4 1983009808
        %v1489 = vunpack.c.0.s8 %v1488
        %v1490 = vperm.slane %v1482, %v1489
        %v1491 = vrot.slane %v1462, 4
        %v1492 = vsel %vm615, %v1491, %v1450
        %v1493 = vrot.slane %v1450, 4
        %v1494 = vsel %vm615, %v1462, %v1493
        %v1496 = vunpack.c.l.s4 1934713408
        %v1497 = vunpack.c.0.s8 %v1496
        %v1498 = vperm.slane %v1492, %v1497
        %v1500 = vunpack.c.l.s4 1934713408
        %v1501 = vunpack.c.0.s8 %v1500
        %v1502 = vperm.slane %v1494, %v1501
        %v1503 = vrot.slane %v1466, 4
        %v1504 = vsel %vm615, %v1503, %v1454
        %v1505 = vrot.slane %v1454, 4
        %v1506 = vsel %vm615, %v1466, %v1505
        %v1508 = vunpack.c.l.s4 1934713408
        %v1509 = vunpack.c.0.s8 %v1508
        %v1510 = vperm.slane %v1504, %v1509
        %v1512 = vunpack.c.l.s4 1934713408
        %v1513 = vunpack.c.0.s8 %v1512
        %v1514 = vperm.slane %v1506, %v1513
        %v1515 = vrot.slane %v1486, 4
        %v1516 = vsel %vm615, %v1515, %v1474
        %v1517 = vrot.slane %v1474, 4
        %v1518 = vsel %vm615, %v1486, %v1517
        %v1520 = vunpack.c.l.s4 1934713408
        %v1521 = vunpack.c.0.s8 %v1520
        %v1522 = vperm.slane %v1516, %v1521
        %v1524 = vunpack.c.l.s4 1934713408
        %v1525 = vunpack.c.0.s8 %v1524
        %v1526 = vperm.slane %v1518, %v1525
        %v1527 = vrot.slane %v1490, 4
        %v1528 = vsel %vm615, %v1527, %v1478
        %v1529 = vrot.slane %v1478, 4
        %v1530 = vsel %vm615, %v1490, %v1529
        %v1532 = vunpack.c.l.s4 1934713408
        %v1533 = vunpack.c.0.s8 %v1532
        %v1534 = vperm.slane %v1528, %v1533
        %v1536 = vunpack.c.l.s4 1934713408
        %v1537 = vunpack.c.0.s8 %v1536
        %v1538 = vperm.slane %v1530, %v1537
        %v1539 = vrot.slane %v1522, 4
        %v1540 = vsel %vm615, %v1539, %v1498
        %v1541 = vrot.slane %v1498, 4
        %v1542 = vsel %vm615, %v1522, %v1541
        %v1543 = vrot.slane %v1526, 4
        %v1544 = vsel %vm615, %v1543, %v1502
        %v1545 = vrot.slane %v1502, 4
        %v1546 = vsel %vm615, %v1526, %v1545
        %v1547 = vrot.slane %v1534, 4
        %v1548 = vsel %vm615, %v1547, %v1510
        %v1549 = vrot.slane %v1510, 4
        %v1550 = vsel %vm615, %v1534, %v1549
        %v1551 = vrot.slane %v1538, 4
        %v1552 = vsel %vm615, %v1551, %v1514
        %v1553 = vrot.slane %v1514, 4
        %v1554 = vsel %vm615, %v1538, %v1553
        %1557 = vrot.lane.b32.xlu0 %v565, 112
        %v1558 = vpop.permute.xlu0 %1557
        %1559 = vrot.lane.b32.xlu0 %v568, 112
        %v1560 = vpop.permute.xlu0 %1559
        %1563 = vrot.lane.b32.xlu0 %v565, 96
        %v1564 = vpop.permute.xlu0 %1563
        %1565 = vrot.lane.b32.xlu0 %v568, 96
        %v1566 = vpop.permute.xlu0 %1565
        %1569 = vrot.lane.b32.xlu0 %v565, 80
        %v1570 = vpop.permute.xlu0 %1569
        %1571 = vrot.lane.b32.xlu0 %v568, 80
        %v1572 = vpop.permute.xlu0 %1571
        %1575 = vrot.lane.b32.xlu0 %v565, 64
        %v1576 = vpop.permute.xlu0 %1575
        %1577 = vrot.lane.b32.xlu0 %v568, 64
        %v1578 = vpop.permute.xlu0 %1577
        %1581 = vrot.lane.b32.xlu0 %v565, 48
        %v1582 = vpop.permute.xlu0 %1581
        %1583 = vrot.lane.b32.xlu0 %v568, 48
        %v1584 = vpop.permute.xlu0 %1583
        %1587 = vrot.lane.b32.xlu0 %v565, 32
        %v1588 = vpop.permute.xlu0 %1587
        %1589 = vrot.lane.b32.xlu0 %v568, 32
        %v1590 = vpop.permute.xlu0 %1589
        %1593 = vrot.lane.b32.xlu0 %v565, 16
        %v1594 = vpop.permute.xlu0 %1593
        %1595 = vrot.lane.b32.xlu0 %v568, 16
        %v1596 = vpop.permute.xlu0 %1595
        %v1599 = vrot.slane %v1564, 4
        %v1600 = vsel %vm615, %v1599, %v565
        %v1601 = vrot.slane %v565, 4
        %v1602 = vsel %vm615, %v1564, %v1601
        %v1604 = vunpack.c.l.s4 1983009808
        %v1605 = vunpack.c.0.s8 %v1604
        %v1606 = vperm.slane %v1600, %v1605
        %v1608 = vunpack.c.l.s4 1983009808
        %v1609 = vunpack.c.0.s8 %v1608
        %v1610 = vperm.slane %v1602, %v1609
        %v1611 = vrot.slane %v1570, 4
        %v1612 = vsel %vm615, %v1611, %v1558
        %v1613 = vrot.slane %v1558, 4
        %v1614 = vsel %vm615, %v1570, %v1613
        %v1616 = vunpack.c.l.s4 1983009808
        %v1617 = vunpack.c.0.s8 %v1616
        %v1618 = vperm.slane %v1612, %v1617
        %v1620 = vunpack.c.l.s4 1983009808
        %v1621 = vunpack.c.0.s8 %v1620
        %v1622 = vperm.slane %v1614, %v1621
        %v1623 = vrot.slane %v1588, 4
        %v1624 = vsel %vm615, %v1623, %v1576
        %v1625 = vrot.slane %v1576, 4
        %v1626 = vsel %vm615, %v1588, %v1625
        %v1628 = vunpack.c.l.s4 1983009808
        %v1629 = vunpack.c.0.s8 %v1628
        %v1630 = vperm.slane %v1624, %v1629
        %v1632 = vunpack.c.l.s4 1983009808
        %v1633 = vunpack.c.0.s8 %v1632
        %v1634 = vperm.slane %v1626, %v1633
        %v1635 = vrot.slane %v1594, 4
        %v1636 = vsel %vm615, %v1635, %v1582
        %v1637 = vrot.slane %v1582, 4
        %v1638 = vsel %vm615, %v1594, %v1637
        %v1640 = vunpack.c.l.s4 1983009808
        %v1641 = vunpack.c.0.s8 %v1640
        %v1642 = vperm.slane %v1636, %v1641
        %v1644 = vunpack.c.l.s4 1983009808
        %v1645 = vunpack.c.0.s8 %v1644
        %v1646 = vperm.slane %v1638, %v1645
        %v1647 = vrot.slane %v1618, 4
        %v1648 = vsel %vm615, %v1647, %v1606
        %v1649 = vrot.slane %v1606, 4
        %v1650 = vsel %vm615, %v1618, %v1649
        %v1652 = vunpack.c.l.s4 1934713408
        %v1653 = vunpack.c.0.s8 %v1652
        %v1654 = vperm.slane %v1648, %v1653
        %v1656 = vunpack.c.l.s4 1934713408
        %v1657 = vunpack.c.0.s8 %v1656
        %v1658 = vperm.slane %v1650, %v1657
        %v1659 = vrot.slane %v1622, 4
        %v1660 = vsel %vm615, %v1659, %v1610
        %v1661 = vrot.slane %v1610, 4
        %v1662 = vsel %vm615, %v1622, %v1661
        %v1664 = vunpack.c.l.s4 1934713408
        %v1665 = vunpack.c.0.s8 %v1664
        %v1666 = vperm.slane %v1660, %v1665
        %v1668 = vunpack.c.l.s4 1934713408
        %v1669 = vunpack.c.0.s8 %v1668
        %v1670 = vperm.slane %v1662, %v1669
        %v1671 = vrot.slane %v1642, 4
        %v1672 = vsel %vm615, %v1671, %v1630
        %v1673 = vrot.slane %v1630, 4
        %v1674 = vsel %vm615, %v1642, %v1673
        %v1676 = vunpack.c.l.s4 1934713408
        %v1677 = vunpack.c.0.s8 %v1676
        %v1678 = vperm.slane %v1672, %v1677
        %v1680 = vunpack.c.l.s4 1934713408
        %v1681 = vunpack.c.0.s8 %v1680
        %v1682 = vperm.slane %v1674, %v1681
        %v1683 = vrot.slane %v1646, 4
        %v1684 = vsel %vm615, %v1683, %v1634
        %v1685 = vrot.slane %v1634, 4
        %v1686 = vsel %vm615, %v1646, %v1685
        %v1688 = vunpack.c.l.s4 1934713408
        %v1689 = vunpack.c.0.s8 %v1688
        %v1690 = vperm.slane %v1684, %v1689
        %v1692 = vunpack.c.l.s4 1934713408
        %v1693 = vunpack.c.0.s8 %v1692
        %v1694 = vperm.slane %v1686, %v1693
        %v1695 = vrot.slane %v1678, 4
        %v1696 = vsel %vm615, %v1695, %v1654
        %v1697 = vrot.slane %v1654, 4
        %v1698 = vsel %vm615, %v1678, %v1697
        %v1699 = vrot.slane %v1682, 4
        %v1700 = vsel %vm615, %v1699, %v1658
        %v1701 = vrot.slane %v1658, 4
        %v1702 = vsel %vm615, %v1682, %v1701
        %v1703 = vrot.slane %v1690, 4
        %v1704 = vsel %vm615, %v1703, %v1666
        %v1705 = vrot.slane %v1666, 4
        %v1706 = vsel %vm615, %v1690, %v1705
        %v1707 = vrot.slane %v1694, 4
        %v1708 = vsel %vm615, %v1707, %v1670
        %v1709 = vrot.slane %v1670, 4
        %v1710 = vsel %vm615, %v1694, %v1709
        %v1711 = vrot.slane %v1566, 4
        %v1712 = vsel %vm615, %v1711, %v568
        %v1713 = vrot.slane %v568, 4
        %v1714 = vsel %vm615, %v1566, %v1713
        %v1716 = vunpack.c.l.s4 1983009808
        %v1717 = vunpack.c.0.s8 %v1716
        %v1718 = vperm.slane %v1712, %v1717
        %v1720 = vunpack.c.l.s4 1983009808
        %v1721 = vunpack.c.0.s8 %v1720
        %v1722 = vperm.slane %v1714, %v1721
        %v1723 = vrot.slane %v1572, 4
        %v1724 = vsel %vm615, %v1723, %v1560
        %v1725 = vrot.slane %v1560, 4
        %v1726 = vsel %vm615, %v1572, %v1725
        %v1728 = vunpack.c.l.s4 1983009808
        %v1729 = vunpack.c.0.s8 %v1728
        %v1730 = vperm.slane %v1724, %v1729
        %v1732 = vunpack.c.l.s4 1983009808
        %v1733 = vunpack.c.0.s8 %v1732
        %v1734 = vperm.slane %v1726, %v1733
        %v1735 = vrot.slane %v1590, 4
        %v1736 = vsel %vm615, %v1735, %v1578
        %v1737 = vrot.slane %v1578, 4
        %v1738 = vsel %vm615, %v1590, %v1737
        %v1740 = vunpack.c.l.s4 1983009808
        %v1741 = vunpack.c.0.s8 %v1740
        %v1742 = vperm.slane %v1736, %v1741
        %v1744 = vunpack.c.l.s4 1983009808
        %v1745 = vunpack.c.0.s8 %v1744
        %v1746 = vperm.slane %v1738, %v1745
        %v1747 = vrot.slane %v1596, 4
        %v1748 = vsel %vm615, %v1747, %v1584
        %v1749 = vrot.slane %v1584, 4
        %v1750 = vsel %vm615, %v1596, %v1749
        %v1752 = vunpack.c.l.s4 1983009808
        %v1753 = vunpack.c.0.s8 %v1752
        %v1754 = vperm.slane %v1748, %v1753
        %v1756 = vunpack.c.l.s4 1983009808
        %v1757 = vunpack.c.0.s8 %v1756
        %v1758 = vperm.slane %v1750, %v1757
        %v1759 = vrot.slane %v1730, 4
        %v1760 = vsel %vm615, %v1759, %v1718
        %v1761 = vrot.slane %v1718, 4
        %v1762 = vsel %vm615, %v1730, %v1761
        %v1764 = vunpack.c.l.s4 1934713408
        %v1765 = vunpack.c.0.s8 %v1764
        %v1766 = vperm.slane %v1760, %v1765
        %v1768 = vunpack.c.l.s4 1934713408
        %v1769 = vunpack.c.0.s8 %v1768
        %v1770 = vperm.slane %v1762, %v1769
        %v1771 = vrot.slane %v1734, 4
        %v1772 = vsel %vm615, %v1771, %v1722
        %v1773 = vrot.slane %v1722, 4
        %v1774 = vsel %vm615, %v1734, %v1773
        %v1776 = vunpack.c.l.s4 1934713408
        %v1777 = vunpack.c.0.s8 %v1776
        %v1778 = vperm.slane %v1772, %v1777
        %v1780 = vunpack.c.l.s4 1934713408
        %v1781 = vunpack.c.0.s8 %v1780
        %v1782 = vperm.slane %v1774, %v1781
        %v1783 = vrot.slane %v1754, 4
        %v1784 = vsel %vm615, %v1783, %v1742
        %v1785 = vrot.slane %v1742, 4
        %v1786 = vsel %vm615, %v1754, %v1785
        %v1788 = vunpack.c.l.s4 1934713408
        %v1789 = vunpack.c.0.s8 %v1788
        %v1790 = vperm.slane %v1784, %v1789
        %v1792 = vunpack.c.l.s4 1934713408
        %v1793 = vunpack.c.0.s8 %v1792
        %v1794 = vperm.slane %v1786, %v1793
        %v1795 = vrot.slane %v1758, 4
        %v1796 = vsel %vm615, %v1795, %v1746
        %v1797 = vrot.slane %v1746, 4
        %v1798 = vsel %vm615, %v1758, %v1797
        %v1800 = vunpack.c.l.s4 1934713408
        %v1801 = vunpack.c.0.s8 %v1800
        %v1802 = vperm.slane %v1796, %v1801
        %v1804 = vunpack.c.l.s4 1934713408
        %v1805 = vunpack.c.0.s8 %v1804
        %v1806 = vperm.slane %v1798, %v1805
        %v1807 = vrot.slane %v1790, 4
        %v1808 = vsel %vm615, %v1807, %v1766
        %v1809 = vrot.slane %v1766, 4
        %v1810 = vsel %vm615, %v1790, %v1809
        %v1811 = vrot.slane %v1794, 4
        %v1812 = vsel %vm615, %v1811, %v1770
        %v1813 = vrot.slane %v1770, 4
        %v1814 = vsel %vm615, %v1794, %v1813
        %v1815 = vrot.slane %v1802, 4
        %v1816 = vsel %vm615, %v1815, %v1778
        %v1817 = vrot.slane %v1778, 4
        %v1818 = vsel %vm615, %v1802, %v1817
        %v1819 = vrot.slane %v1806, 4
        %v1820 = vsel %vm615, %v1819, %v1782
        %v1821 = vrot.slane %v1782, 4
        %v1822 = vsel %vm615, %v1806, %v1821
        %v1823 = vrot.slane %v1700, 4
        %v1824 = vsel %vm615, %v1823, %v1696
        %v1825 = vrot.slane %v1696, 4
        %v1826 = vsel %vm615, %v1700, %v1825
        %v1828 = vunpack.c.l.s4 1983009808
        %v1829 = vunpack.c.0.s8 %v1828
        %v1830 = vperm.slane %v1824, %v1829
        %v1832 = vunpack.c.l.s4 1983009808
        %v1833 = vunpack.c.0.s8 %v1832
        %v1834 = vperm.slane %v1826, %v1833
        %v1835 = vrot.slane %v1702, 4
        %v1836 = vsel %vm615, %v1835, %v1698
        %v1837 = vrot.slane %v1698, 4
        %v1838 = vsel %vm615, %v1702, %v1837
        %v1840 = vunpack.c.l.s4 1983009808
        %v1841 = vunpack.c.0.s8 %v1840
        %v1842 = vperm.slane %v1836, %v1841
        %v1844 = vunpack.c.l.s4 1983009808
        %v1845 = vunpack.c.0.s8 %v1844
        %v1846 = vperm.slane %v1838, %v1845
        %v1847 = vrot.slane %v1708, 4
        %v1848 = vsel %vm615, %v1847, %v1704
        %v1849 = vrot.slane %v1704, 4
        %v1850 = vsel %vm615, %v1708, %v1849
        %v1852 = vunpack.c.l.s4 1983009808
        %v1853 = vunpack.c.0.s8 %v1852
        %v1854 = vperm.slane %v1848, %v1853
        %v1856 = vunpack.c.l.s4 1983009808
        %v1857 = vunpack.c.0.s8 %v1856
        %v1858 = vperm.slane %v1850, %v1857
        %v1859 = vrot.slane %v1710, 4
        %v1860 = vsel %vm615, %v1859, %v1706
        %v1861 = vrot.slane %v1706, 4
        %v1862 = vsel %vm615, %v1710, %v1861
        %v1864 = vunpack.c.l.s4 1983009808
        %v1865 = vunpack.c.0.s8 %v1864
        %v1866 = vperm.slane %v1860, %v1865
        %v1868 = vunpack.c.l.s4 1983009808
        %v1869 = vunpack.c.0.s8 %v1868
        %v1870 = vperm.slane %v1862, %v1869
        %v1871 = vrot.slane %v1842, 4
        %v1872 = vsel %vm615, %v1871, %v1830
        %v1873 = vrot.slane %v1830, 4
        %v1874 = vsel %vm615, %v1842, %v1873
        %v1876 = vunpack.c.l.s4 1934713408
        %v1877 = vunpack.c.0.s8 %v1876
        %v1878 = vperm.slane %v1872, %v1877
        %v1880 = vunpack.c.l.s4 1934713408
        %v1881 = vunpack.c.0.s8 %v1880
        %v1882 = vperm.slane %v1874, %v1881
        %v1883 = vrot.slane %v1846, 4
        %v1884 = vsel %vm615, %v1883, %v1834
        %v1885 = vrot.slane %v1834, 4
        %v1886 = vsel %vm615, %v1846, %v1885
        %v1888 = vunpack.c.l.s4 1934713408
        %v1889 = vunpack.c.0.s8 %v1888
        %v1890 = vperm.slane %v1884, %v1889
        %v1892 = vunpack.c.l.s4 1934713408
        %v1893 = vunpack.c.0.s8 %v1892
        %v1894 = vperm.slane %v1886, %v1893
        %v1895 = vrot.slane %v1866, 4
        %v1896 = vsel %vm615, %v1895, %v1854
        %v1897 = vrot.slane %v1854, 4
        %v1898 = vsel %vm615, %v1866, %v1897
        %v1900 = vunpack.c.l.s4 1934713408
        %v1901 = vunpack.c.0.s8 %v1900
        %v1902 = vperm.slane %v1896, %v1901
        %v1904 = vunpack.c.l.s4 1934713408
        %v1905 = vunpack.c.0.s8 %v1904
        %v1906 = vperm.slane %v1898, %v1905
        %v1907 = vrot.slane %v1870, 4
        %v1908 = vsel %vm615, %v1907, %v1858
        %v1909 = vrot.slane %v1858, 4
        %v1910 = vsel %vm615, %v1870, %v1909
        %v1912 = vunpack.c.l.s4 1934713408
        %v1913 = vunpack.c.0.s8 %v1912
        %v1914 = vperm.slane %v1908, %v1913
        %v1916 = vunpack.c.l.s4 1934713408
        %v1917 = vunpack.c.0.s8 %v1916
        %v1918 = vperm.slane %v1910, %v1917
        %v1919 = vrot.slane %v1902, 4
        %v1920 = vsel %vm615, %v1919, %v1878
        %v1921 = vrot.slane %v1878, 4
        %v1922 = vsel %vm615, %v1902, %v1921
        %v1923 = vrot.slane %v1906, 4
        %v1924 = vsel %vm615, %v1923, %v1882
        %v1925 = vrot.slane %v1882, 4
        %v1926 = vsel %vm615, %v1906, %v1925
        %v1927 = vrot.slane %v1914, 4
        %v1928 = vsel %vm615, %v1927, %v1890
        %v1929 = vrot.slane %v1890, 4
        %v1930 = vsel %vm615, %v1914, %v1929
        %v1931 = vrot.slane %v1918, 4
        %v1932 = vsel %vm615, %v1931, %v1894
        %v1933 = vrot.slane %v1894, 4
        %v1934 = vsel %vm615, %v1918, %v1933
        %v1935 = vrot.slane %v1812, 4
        %v1936 = vsel %vm615, %v1935, %v1808
        %v1937 = vrot.slane %v1808, 4
        %v1938 = vsel %vm615, %v1812, %v1937
        %v1940 = vunpack.c.l.s4 1983009808
        %v1941 = vunpack.c.0.s8 %v1940
        %v1942 = vperm.slane %v1936, %v1941
        %v1944 = vunpack.c.l.s4 1983009808
        %v1945 = vunpack.c.0.s8 %v1944
        %v1946 = vperm.slane %v1938, %v1945
        %v1947 = vrot.slane %v1814, 4
        %v1948 = vsel %vm615, %v1947, %v1810
        %v1949 = vrot.slane %v1810, 4
        %v1950 = vsel %vm615, %v1814, %v1949
        %v1952 = vunpack.c.l.s4 1983009808
        %v1953 = vunpack.c.0.s8 %v1952
        %v1954 = vperm.slane %v1948, %v1953
        %v1956 = vunpack.c.l.s4 1983009808
        %v1957 = vunpack.c.0.s8 %v1956
        %v1958 = vperm.slane %v1950, %v1957
        %v1959 = vrot.slane %v1820, 4
        %v1960 = vsel %vm615, %v1959, %v1816
        %v1961 = vrot.slane %v1816, 4
        %v1962 = vsel %vm615, %v1820, %v1961
        %v1964 = vunpack.c.l.s4 1983009808
        %v1965 = vunpack.c.0.s8 %v1964
        %v1966 = vperm.slane %v1960, %v1965
        %v1968 = vunpack.c.l.s4 1983009808
        %v1969 = vunpack.c.0.s8 %v1968
        %v1970 = vperm.slane %v1962, %v1969
        %v1971 = vrot.slane %v1822, 4
        %v1972 = vsel %vm615, %v1971, %v1818
        %v1973 = vrot.slane %v1818, 4
        %v1974 = vsel %vm615, %v1822, %v1973
        %v1976 = vunpack.c.l.s4 1983009808
        %v1977 = vunpack.c.0.s8 %v1976
        %v1978 = vperm.slane %v1972, %v1977
        %v1980 = vunpack.c.l.s4 1983009808
        %v1981 = vunpack.c.0.s8 %v1980
        %v1982 = vperm.slane %v1974, %v1981
        %v1983 = vrot.slane %v1954, 4
        %v1984 = vsel %vm615, %v1983, %v1942
        %v1985 = vrot.slane %v1942, 4
        %v1986 = vsel %vm615, %v1954, %v1985
        %v1988 = vunpack.c.l.s4 1934713408
        %v1989 = vunpack.c.0.s8 %v1988
        %v1990 = vperm.slane %v1984, %v1989
        %v1992 = vunpack.c.l.s4 1934713408
        %v1993 = vunpack.c.0.s8 %v1992
        %v1994 = vperm.slane %v1986, %v1993
        %v1995 = vrot.slane %v1958, 4
        %v1996 = vsel %vm615, %v1995, %v1946
        %v1997 = vrot.slane %v1946, 4
        %v1998 = vsel %vm615, %v1958, %v1997
        %v2000 = vunpack.c.l.s4 1934713408
        %v2001 = vunpack.c.0.s8 %v2000
        %v2002 = vperm.slane %v1996, %v2001
        %v2004 = vunpack.c.l.s4 1934713408
        %v2005 = vunpack.c.0.s8 %v2004
        %v2006 = vperm.slane %v1998, %v2005
        %v2007 = vrot.slane %v1978, 4
        %v2008 = vsel %vm615, %v2007, %v1966
        %v2009 = vrot.slane %v1966, 4
        %v2010 = vsel %vm615, %v1978, %v2009
        %v2012 = vunpack.c.l.s4 1934713408
        %v2013 = vunpack.c.0.s8 %v2012
        %v2014 = vperm.slane %v2008, %v2013
        %v2016 = vunpack.c.l.s4 1934713408
        %v2017 = vunpack.c.0.s8 %v2016
        %v2018 = vperm.slane %v2010, %v2017
        %v2019 = vrot.slane %v1982, 4
        %v2020 = vsel %vm615, %v2019, %v1970
        %v2021 = vrot.slane %v1970, 4
        %v2022 = vsel %vm615, %v1982, %v2021
        %v2024 = vunpack.c.l.s4 1934713408
        %v2025 = vunpack.c.0.s8 %v2024
        %v2026 = vperm.slane %v2020, %v2025
        %v2028 = vunpack.c.l.s4 1934713408
        %v2029 = vunpack.c.0.s8 %v2028
        %v2030 = vperm.slane %v2022, %v2029
        %v2031 = vrot.slane %v2014, 4
        %v2032 = vsel %vm615, %v2031, %v1990
        %v2033 = vrot.slane %v1990, 4
        %v2034 = vsel %vm615, %v2014, %v2033
        %v2035 = vrot.slane %v2018, 4
        %v2036 = vsel %vm615, %v2035, %v1994
        %v2037 = vrot.slane %v1994, 4
        %v2038 = vsel %vm615, %v2018, %v2037
        %v2039 = vrot.slane %v2026, 4
        %v2040 = vsel %vm615, %v2039, %v2002
        %v2041 = vrot.slane %v2002, 4
        %v2042 = vsel %vm615, %v2026, %v2041
        %v2043 = vrot.slane %v2030, 4
        %v2044 = vsel %vm615, %v2043, %v2006
        %v2045 = vrot.slane %v2006, 4
        %v2046 = vsel %vm615, %v2030, %v2045
        %vm2047 = vcmask 130048
        %v2049 = vsel %vm2047, %v936, 0
        %v2052 = vsel %vm2047, %v1048, 0
        %v2055 = vsel %vm2047, %v1428, 0
        %v2058 = vsel %vm2047, %v1540, 0
        %2060 = vmatpush.xpose.msra.mxu0 0.0
        %2061 = vmatpush.xpose.msra.mxu0 0.0
        %2062 = vmatpush.xpose.msra.mxu0 0.0
        %2063 = vmatpush.xpose.msra.mxu0 0.0
        %2064 = vmatpush.xpose.msra.mxu0 0.0
        %2065 = vmatpush.xpose.msra.mxu0 0.0
        %2066 = vmatpush.xpose.msra.mxu0 0.0
        %2067 = vmatpush.xpose.msra.mxu0 0.0
        %2068 = vmatpush.xpose.msra.mxu0 0.0
        %2069 = vmatpush.xpose.msra.mxu0 0.0
        %2070 = vmatpush.xpose.msra.mxu0 0.0
        %2071 = vmatpush.xpose.msra.mxu0 0.0
        %2072 = vmatpush.xpose.msra.mxu0 0.0
        %2073 = vmatpush.xpose.msra.mxu0 0.0
        %2074 = vmatpush.xpose.msra.mxu0 %v2058
        %2075 = vmatpush.xpose.msra.mxu0 %v2055
        %2076 = vmatmul.f32.gmra.mxu0 %v2049
        %v2077 = vpop.f32.mrf.mxu0
        %v2078 = vadd.f32 0.0, %v2077
        %2079 = vmatmul.f32.gmra.mxu0 %v2052
        %v2080 = vpop.f32.mrf.mxu0
        %v2081 = vadd.f32 0.0, %v2080
        %2082 = vdwg.mxu0
        %v2084 = vsel %vm2047, %v938, 0
        %v2087 = vsel %vm2047, %v1050, 0
        %v2090 = vsel %vm2047, %v1430, 0
        %v2093 = vsel %vm2047, %v1542, 0
        %2095 = vmatpush.xpose.msra.mxu0 0.0
        %2096 = vmatpush.xpose.msra.mxu0 0.0
        %2097 = vmatpush.xpose.msra.mxu0 0.0
        %2098 = vmatpush.xpose.msra.mxu0 0.0
        %2099 = vmatpush.xpose.msra.mxu0 0.0
        %2100 = vmatpush.xpose.msra.mxu0 0.0
        %2101 = vmatpush.xpose.msra.mxu0 0.0
        %2102 = vmatpush.xpose.msra.mxu0 0.0
        %2103 = vmatpush.xpose.msra.mxu0 0.0
        %2104 = vmatpush.xpose.msra.mxu0 0.0
        %2105 = vmatpush.xpose.msra.mxu0 0.0
        %2106 = vmatpush.xpose.msra.mxu0 0.0
        %2107 = vmatpush.xpose.msra.mxu0 0.0
        %2108 = vmatpush.xpose.msra.mxu0 0.0
        %2109 = vmatpush.xpose.msra.mxu0 %v2093
        %2110 = vmatpush.xpose.msra.mxu0 %v2090
        %2111 = vmatmul.f32.gmra.mxu0 %v2084
        %v2112 = vpop.f32.mrf.mxu0
        %v2113 = vadd.f32 0.0, %v2112
        %2114 = vmatmul.f32.gmra.mxu0 %v2087
        %v2115 = vpop.f32.mrf.mxu0
        %v2116 = vadd.f32 0.0, %v2115
        %2117 = vdwg.mxu0
        %v2119 = vsel %vm2047, %v940, 0
        %v2122 = vsel %vm2047, %v1052, 0
        %v2125 = vsel %vm2047, %v1432, 0
        %v2128 = vsel %vm2047, %v1544, 0
        %2130 = vmatpush.xpose.msra.mxu0 0.0
        %2131 = vmatpush.xpose.msra.mxu0 0.0
        %2132 = vmatpush.xpose.msra.mxu0 0.0
        %2133 = vmatpush.xpose.msra.mxu0 0.0
        %2134 = vmatpush.xpose.msra.mxu0 0.0
        %2135 = vmatpush.xpose.msra.mxu0 0.0
        %2136 = vmatpush.xpose.msra.mxu0 0.0
        %2137 = vmatpush.xpose.msra.mxu0 0.0
        %2138 = vmatpush.xpose.msra.mxu0 0.0
        %2139 = vmatpush.xpose.msra.mxu0 0.0
        %2140 = vmatpush.xpose.msra.mxu0 0.0
        %2141 = vmatpush.xpose.msra.mxu0 0.0
        %2142 = vmatpush.xpose.msra.mxu0 0.0
        %2143 = vmatpush.xpose.msra.mxu0 0.0
        %2144 = vmatpush.xpose.msra.mxu0 %v2128
        %2145 = vmatpush.xpose.msra.mxu0 %v2125
        %2146 = vmatmul.f32.gmra.mxu0 %v2119
        %v2147 = vpop.f32.mrf.mxu0
        %v2148 = vadd.f32 0.0, %v2147
        %2149 = vmatmul.f32.gmra.mxu0 %v2122
        %v2150 = vpop.f32.mrf.mxu0
        %v2151 = vadd.f32 0.0, %v2150
        %2152 = vdwg.mxu0
        %v2154 = vsel %vm2047, %v942, 0
        %v2157 = vsel %vm2047, %v1054, 0
        %v2160 = vsel %vm2047, %v1434, 0
        %v2163 = vsel %vm2047, %v1546, 0
        %2165 = vmatpush.xpose.msra.mxu0 0.0
        %2166 = vmatpush.xpose.msra.mxu0 0.0
        %2167 = vmatpush.xpose.msra.mxu0 0.0
        %2168 = vmatpush.xpose.msra.mxu0 0.0
        %2169 = vmatpush.xpose.msra.mxu0 0.0
        %2170 = vmatpush.xpose.msra.mxu0 0.0
        %2171 = vmatpush.xpose.msra.mxu0 0.0
        %2172 = vmatpush.xpose.msra.mxu0 0.0
        %2173 = vmatpush.xpose.msra.mxu0 0.0
        %2174 = vmatpush.xpose.msra.mxu0 0.0
        %2175 = vmatpush.xpose.msra.mxu0 0.0
        %2176 = vmatpush.xpose.msra.mxu0 0.0
        %2177 = vmatpush.xpose.msra.mxu0 0.0
        %2178 = vmatpush.xpose.msra.mxu0 0.0
        %2179 = vmatpush.xpose.msra.mxu0 %v2163
        %2180 = vmatpush.xpose.msra.mxu0 %v2160
        %2181 = vmatmul.f32.gmra.mxu0 %v2154
        %v2182 = vpop.f32.mrf.mxu0
        %v2183 = vadd.f32 0.0, %v2182
        %2184 = vmatmul.f32.gmra.mxu0 %v2157
        %v2185 = vpop.f32.mrf.mxu0
        %v2186 = vadd.f32 0.0, %v2185
        %2187 = vdwg.mxu0
        %v2189 = vsel %vm2047, %v944, 0
        %v2192 = vsel %vm2047, %v1056, 0
        %v2195 = vsel %vm2047, %v1436, 0
        %v2198 = vsel %vm2047, %v1548, 0
        %2200 = vmatpush.xpose.msra.mxu0 0.0
        %2201 = vmatpush.xpose.msra.mxu0 0.0
        %2202 = vmatpush.xpose.msra.mxu0 0.0
        %2203 = vmatpush.xpose.msra.mxu0 0.0
        %2204 = vmatpush.xpose.msra.mxu0 0.0
        %2205 = vmatpush.xpose.msra.mxu0 0.0
        %2206 = vmatpush.xpose.msra.mxu0 0.0
        %2207 = vmatpush.xpose.msra.mxu0 0.0
        %2208 = vmatpush.xpose.msra.mxu0 0.0
        %2209 = vmatpush.xpose.msra.mxu0 0.0
        %2210 = vmatpush.xpose.msra.mxu0 0.0
        %2211 = vmatpush.xpose.msra.mxu0 0.0
        %2212 = vmatpush.xpose.msra.mxu0 0.0
        %2213 = vmatpush.xpose.msra.mxu0 0.0
        %2214 = vmatpush.xpose.msra.mxu0 %v2198
        %2215 = vmatpush.xpose.msra.mxu0 %v2195
        %2216 = vmatmul.f32.gmra.mxu0 %v2189
        %v2217 = vpop.f32.mrf.mxu0
        %v2218 = vadd.f32 0.0, %v2217
        %2219 = vmatmul.f32.gmra.mxu0 %v2192
        %v2220 = vpop.f32.mrf.mxu0
        %v2221 = vadd.f32 0.0, %v2220
        %2222 = vdwg.mxu0
        %v2224 = vsel %vm2047, %v946, 0
        %v2227 = vsel %vm2047, %v1058, 0
        %v2230 = vsel %vm2047, %v1438, 0
        %v2233 = vsel %vm2047, %v1550, 0
        %2235 = vmatpush.xpose.msra.mxu0 0.0
        %2236 = vmatpush.xpose.msra.mxu0 0.0
        %2237 = vmatpush.xpose.msra.mxu0 0.0
        %2238 = vmatpush.xpose.msra.mxu0 0.0
        %2239 = vmatpush.xpose.msra.mxu0 0.0
        %2240 = vmatpush.xpose.msra.mxu0 0.0
        %2241 = vmatpush.xpose.msra.mxu0 0.0
        %2242 = vmatpush.xpose.msra.mxu0 0.0
        %2243 = vmatpush.xpose.msra.mxu0 0.0
        %2244 = vmatpush.xpose.msra.mxu0 0.0
        %2245 = vmatpush.xpose.msra.mxu0 0.0
        %2246 = vmatpush.xpose.msra.mxu0 0.0
        %2247 = vmatpush.xpose.msra.mxu0 0.0
        %2248 = vmatpush.xpose.msra.mxu0 0.0
        %2249 = vmatpush.xpose.msra.mxu0 %v2233
        %2250 = vmatpush.xpose.msra.mxu0 %v2230
        %2251 = vmatmul.f32.gmra.mxu0 %v2224
        %v2252 = vpop.f32.mrf.mxu0
        %v2253 = vadd.f32 0.0, %v2252
        %2254 = vmatmul.f32.gmra.mxu0 %v2227
        %v2255 = vpop.f32.mrf.mxu0
        %v2256 = vadd.f32 0.0, %v2255
        %2257 = vdwg.mxu0
        %v2259 = vsel %vm2047, %v948, 0
        %v2262 = vsel %vm2047, %v1060, 0
        %v2265 = vsel %vm2047, %v1440, 0
        %v2268 = vsel %vm2047, %v1552, 0
        %2270 = vmatpush.xpose.msra.mxu0 0.0
        %2271 = vmatpush.xpose.msra.mxu0 0.0
        %2272 = vmatpush.xpose.msra.mxu0 0.0
        %2273 = vmatpush.xpose.msra.mxu0 0.0
        %2274 = vmatpush.xpose.msra.mxu0 0.0
        %2275 = vmatpush.xpose.msra.mxu0 0.0
        %2276 = vmatpush.xpose.msra.mxu0 0.0
        %2277 = vmatpush.xpose.msra.mxu0 0.0
        %2278 = vmatpush.xpose.msra.mxu0 0.0
        %2279 = vmatpush.xpose.msra.mxu0 0.0
        %2280 = vmatpush.xpose.msra.mxu0 0.0
        %2281 = vmatpush.xpose.msra.mxu0 0.0
        %2282 = vmatpush.xpose.msra.mxu0 0.0
        %2283 = vmatpush.xpose.msra.mxu0 0.0
        %2284 = vmatpush.xpose.msra.mxu0 %v2268
        %2285 = vmatpush.xpose.msra.mxu0 %v2265
        %2286 = vmatmul.f32.gmra.mxu0 %v2259
        %v2287 = vpop.f32.mrf.mxu0
        %v2288 = vadd.f32 0.0, %v2287
        %2289 = vmatmul.f32.gmra.mxu0 %v2262
        %v2290 = vpop.f32.mrf.mxu0
        %v2291 = vadd.f32 0.0, %v2290
        %2292 = vdwg.mxu0
        %v2294 = vsel %vm2047, %v950, 0
        %v2297 = vsel %vm2047, %v1062, 0
        %v2300 = vsel %vm2047, %v1442, 0
        %v2303 = vsel %vm2047, %v1554, 0
        %2305 = vmatpush.xpose.msra.mxu0 0.0
        %2306 = vmatpush.xpose.msra.mxu0 0.0
        %2307 = vmatpush.xpose.msra.mxu0 0.0
        %2308 = vmatpush.xpose.msra.mxu0 0.0
        %2309 = vmatpush.xpose.msra.mxu0 0.0
        %2310 = vmatpush.xpose.msra.mxu0 0.0
        %2311 = vmatpush.xpose.msra.mxu0 0.0
        %2312 = vmatpush.xpose.msra.mxu0 0.0
        %2313 = vmatpush.xpose.msra.mxu0 0.0
        %2314 = vmatpush.xpose.msra.mxu0 0.0
        %2315 = vmatpush.xpose.msra.mxu0 0.0
        %2316 = vmatpush.xpose.msra.mxu0 0.0
        %2317 = vmatpush.xpose.msra.mxu0 0.0
        %2318 = vmatpush.xpose.msra.mxu0 0.0
        %2319 = vmatpush.xpose.msra.mxu0 %v2303
        %2320 = vmatpush.xpose.msra.mxu0 %v2300
        %2321 = vmatmul.f32.gmra.mxu0 %v2294
        %v2322 = vpop.f32.mrf.mxu0
        %v2323 = vadd.f32 0.0, %v2322
        %2324 = vmatmul.f32.gmra.mxu0 %v2297
        %v2325 = vpop.f32.mrf.mxu0
        %v2326 = vadd.f32 0.0, %v2325
        %2327 = vdwg.mxu0
        %v2328 = vsel %vm2047, %v2078, -inf
        %2329 = vmax.xlane.f32.xlu0 %v2328
        %v2330 = vpop.xlane.xlu0 %2329
        %v2331 = vsel %vm2047, %v2081, -inf
        %2332 = vmax.xlane.f32.xlu0 %v2331
        %v2333 = vpop.xlane.xlu0 %2332
        %v2334 = vsel %vm2047, %v2113, -inf
        %2335 = vmax.xlane.f32.xlu0 %v2334
        %v2336 = vpop.xlane.xlu0 %2335
        %v2337 = vsel %vm2047, %v2116, -inf
        %2338 = vmax.xlane.f32.xlu0 %v2337
        %v2339 = vpop.xlane.xlu0 %2338
        %v2340 = vsel %vm2047, %v2148, -inf
        %2341 = vmax.xlane.f32.xlu0 %v2340
        %v2342 = vpop.xlane.xlu0 %2341
        %v2343 = vsel %vm2047, %v2151, -inf
        %2344 = vmax.xlane.f32.xlu0 %v2343
        %v2345 = vpop.xlane.xlu0 %2344
        %v2346 = vsel %vm2047, %v2183, -inf
        %2347 = vmax.xlane.f32.xlu0 %v2346
        %v2348 = vpop.xlane.xlu0 %2347
        %v2349 = vsel %vm2047, %v2186, -inf
        %2350 = vmax.xlane.f32.xlu0 %v2349
        %v2351 = vpop.xlane.xlu0 %2350
        %v2352 = vsel %vm2047, %v2218, -inf
        %2353 = vmax.xlane.f32.xlu0 %v2352
        %v2354 = vpop.xlane.xlu0 %2353
        %v2355 = vsel %vm2047, %v2221, -inf
        %2356 = vmax.xlane.f32.xlu0 %v2355
        %v2357 = vpop.xlane.xlu0 %2356
        %v2358 = vsel %vm2047, %v2253, -inf
        %2359 = vmax.xlane.f32.xlu0 %v2358
        %v2360 = vpop.xlane.xlu0 %2359
        %v2361 = vsel %vm2047, %v2256, -inf
        %2362 = vmax.xlane.f32.xlu0 %v2361
        %v2363 = vpop.xlane.xlu0 %2362
        %v2364 = vsel %vm2047, %v2288, -inf
        %2365 = vmax.xlane.f32.xlu0 %v2364
        %v2366 = vpop.xlane.xlu0 %2365
        %v2367 = vsel %vm2047, %v2291, -inf
        %2368 = vmax.xlane.f32.xlu0 %v2367
        %v2369 = vpop.xlane.xlu0 %2368
        %v2370 = vsel %vm2047, %v2323, -inf
        %2371 = vmax.xlane.f32.xlu0 %v2370
        %v2372 = vpop.xlane.xlu0 %2371
        %v2373 = vsel %vm2047, %v2326, -inf
        %2374 = vmax.xlane.f32.xlu0 %v2373
        %v2375 = vpop.xlane.xlu0 %2374
        %v2376 = vsub.f32 %v2078, %v2330
        %v2377 = vsub.f32 %v2081, %v2333
        %v2378 = vsub.f32 %v2113, %v2336
        %v2379 = vsub.f32 %v2116, %v2339
        %v2380 = vsub.f32 %v2148, %v2342
        %v2381 = vsub.f32 %v2151, %v2345
        %v2382 = vsub.f32 %v2183, %v2348
        %v2383 = vsub.f32 %v2186, %v2351
        %v2384 = vsub.f32 %v2218, %v2354
        %v2385 = vsub.f32 %v2221, %v2357
        %v2386 = vsub.f32 %v2253, %v2360
        %v2387 = vsub.f32 %v2256, %v2363
        %v2388 = vsub.f32 %v2288, %v2366
        %v2389 = vsub.f32 %v2291, %v2369
        %v2390 = vsub.f32 %v2323, %v2372
        %v2391 = vsub.f32 %v2326, %v2375
        %v2392 = vmul.f32 %v2376, 1.442695
        %v2393 = vpow.pop %v2392
        %v2394 = vmul.f32 %v2377, 1.442695
        %v2395 = vpow.pop %v2394
        %v2396 = vmul.f32 %v2378, 1.442695
        %v2397 = vpow.pop %v2396
        %v2398 = vmul.f32 %v2379, 1.442695
        %v2399 = vpow.pop %v2398
        %v2400 = vmul.f32 %v2380, 1.442695
        %v2401 = vpow.pop %v2400
        %v2402 = vmul.f32 %v2381, 1.442695
        %v2403 = vpow.pop %v2402
        %v2404 = vmul.f32 %v2382, 1.442695
        %v2405 = vpow.pop %v2404
        %v2406 = vmul.f32 %v2383, 1.442695
        %v2407 = vpow.pop %v2406
        %v2408 = vmul.f32 %v2384, 1.442695
        %v2409 = vpow.pop %v2408
        %v2410 = vmul.f32 %v2385, 1.442695
        %v2411 = vpow.pop %v2410
        %v2412 = vmul.f32 %v2386, 1.442695
        %v2413 = vpow.pop %v2412
        %v2414 = vmul.f32 %v2387, 1.442695
        %v2415 = vpow.pop %v2414
        %v2416 = vmul.f32 %v2388, 1.442695
        %v2417 = vpow.pop %v2416
        %v2418 = vmul.f32 %v2389, 1.442695
        %v2419 = vpow.pop %v2418
        %v2420 = vmul.f32 %v2390, 1.442695
        %v2421 = vpow.pop %v2420
        %v2422 = vmul.f32 %v2391, 1.442695
        %v2423 = vpow.pop %v2422
        %v2424 = vsel %vm2047, %v2393, 0.0
        %2425 = vadd.xlane.f32.xlu0 %v2424
        %v2426 = vpop.xlane.xlu0 %2425
        %v2427 = vsel %vm2047, %v2395, 0.0
        %2428 = vadd.xlane.f32.xlu0 %v2427
        %v2429 = vpop.xlane.xlu0 %2428
        %v2430 = vsel %vm2047, %v2397, 0.0
        %2431 = vadd.xlane.f32.xlu0 %v2430
        %v2432 = vpop.xlane.xlu0 %2431
        %v2433 = vsel %vm2047, %v2399, 0.0
        %2434 = vadd.xlane.f32.xlu0 %v2433
        %v2435 = vpop.xlane.xlu0 %2434
        %v2436 = vsel %vm2047, %v2401, 0.0
        %2437 = vadd.xlane.f32.xlu0 %v2436
        %v2438 = vpop.xlane.xlu0 %2437
        %v2439 = vsel %vm2047, %v2403, 0.0
        %2440 = vadd.xlane.f32.xlu0 %v2439
        %v2441 = vpop.xlane.xlu0 %2440
        %v2442 = vsel %vm2047, %v2405, 0.0
        %2443 = vadd.xlane.f32.xlu0 %v2442
        %v2444 = vpop.xlane.xlu0 %2443
        %v2445 = vsel %vm2047, %v2407, 0.0
        %2446 = vadd.xlane.f32.xlu0 %v2445
        %v2447 = vpop.xlane.xlu0 %2446
        %v2448 = vsel %vm2047, %v2409, 0.0
        %2449 = vadd.xlane.f32.xlu0 %v2448
        %v2450 = vpop.xlane.xlu0 %2449
        %v2451 = vsel %vm2047, %v2411, 0.0
        %2452 = vadd.xlane.f32.xlu0 %v2451
        %v2453 = vpop.xlane.xlu0 %2452
        %v2454 = vsel %vm2047, %v2413, 0.0
        %2455 = vadd.xlane.f32.xlu0 %v2454
        %v2456 = vpop.xlane.xlu0 %2455
        %v2457 = vsel %vm2047, %v2415, 0.0
        %2458 = vadd.xlane.f32.xlu0 %v2457
        %v2459 = vpop.xlane.xlu0 %2458
        %v2460 = vsel %vm2047, %v2417, 0.0
        %2461 = vadd.xlane.f32.xlu0 %v2460
        %v2462 = vpop.xlane.xlu0 %2461
        %v2463 = vsel %vm2047, %v2419, 0.0
        %2464 = vadd.xlane.f32.xlu0 %v2463
        %v2465 = vpop.xlane.xlu0 %2464
        %v2466 = vsel %vm2047, %v2421, 0.0
        %2467 = vadd.xlane.f32.xlu0 %v2466
        %v2468 = vpop.xlane.xlu0 %2467
        %v2469 = vsel %vm2047, %v2423, 0.0
        %2470 = vadd.xlane.f32.xlu0 %v2469
        %v2471 = vpop.xlane.xlu0 %2470
        %v2472 = vrcp.pop %v2426
        %v2473 = vrcp.pop %v2429
        %v2474 = vrcp.pop %v2432
        %v2475 = vrcp.pop %v2435
        %v2476 = vrcp.pop %v2438
        %v2477 = vrcp.pop %v2441
        %v2478 = vrcp.pop %v2444
        %v2479 = vrcp.pop %v2447
        %v2480 = vrcp.pop %v2450
        %v2481 = vrcp.pop %v2453
        %v2482 = vrcp.pop %v2456
        %v2483 = vrcp.pop %v2459
        %v2484 = vrcp.pop %v2462
        %v2485 = vrcp.pop %v2465
        %v2486 = vrcp.pop %v2468
        %v2487 = vrcp.pop %v2471
        %v2488 = vmul.f32 %v2393, %v2472
        %v2489 = vmul.f32 %v2395, %v2473
        %v2490 = vmul.f32 %v2397, %v2474
        %v2491 = vmul.f32 %v2399, %v2475
        %v2492 = vmul.f32 %v2401, %v2476
        %v2493 = vmul.f32 %v2403, %v2477
        %v2494 = vmul.f32 %v2405, %v2478
        %v2495 = vmul.f32 %v2407, %v2479
        %v2496 = vmul.f32 %v2409, %v2480
        %v2497 = vmul.f32 %v2411, %v2481
        %v2498 = vmul.f32 %v2413, %v2482
        %v2499 = vmul.f32 %v2415, %v2483
        %v2500 = vmul.f32 %v2417, %v2484
        %v2501 = vmul.f32 %v2419, %v2485
        %v2502 = vmul.f32 %v2421, %v2486
        %v2503 = vmul.f32 %v2423, %v2487
        %v2505 = vsel %vm2047, %v2488, 0
        %v2508 = vsel %vm2047, %v2489, 0
        %2510 = vmatpush.msra.mxu0 0.0
        %2511 = vmatpush.msra.mxu0 0.0
        %2512 = vmatpush.msra.mxu0 0.0
        %2513 = vmatpush.msra.mxu0 0.0
        %2514 = vmatpush.msra.mxu0 0.0
        %2515 = vmatpush.msra.mxu0 0.0
        %2516 = vmatpush.msra.mxu0 0.0
        %2517 = vmatpush.msra.mxu0 0.0
        %2518 = vmatpush.msra.mxu0 0.0
        %2519 = vmatpush.msra.mxu0 0.0
        %2520 = vmatpush.msra.mxu0 0.0
        %2521 = vmatpush.msra.mxu0 0.0
        %2522 = vmatpush.msra.mxu0 0.0
        %2523 = vmatpush.msra.mxu0 0.0
        %2524 = vmatpush.msra.mxu0 %v2032
        %2525 = vmatpush.msra.mxu0 %v1920
        %2526 = vmatmul.f32.gmra.mxu0 %v2505
        %v2527 = vpop.f32.mrf.mxu0
        %v2528 = vadd.f32 0.0, %v2527
        %2529 = vmatmul.f32.gmra.mxu0 %v2508
        %v2530 = vpop.f32.mrf.mxu0
        %v2531 = vadd.f32 0.0, %v2530
        %2532 = vdwg.mxu0
        %v2534 = vsel %vm2047, %v2490, 0
        %v2537 = vsel %vm2047, %v2491, 0
        %2539 = vmatpush.msra.mxu0 0.0
        %2540 = vmatpush.msra.mxu0 0.0
        %2541 = vmatpush.msra.mxu0 0.0
        %2542 = vmatpush.msra.mxu0 0.0
        %2543 = vmatpush.msra.mxu0 0.0
        %2544 = vmatpush.msra.mxu0 0.0
        %2545 = vmatpush.msra.mxu0 0.0
        %2546 = vmatpush.msra.mxu0 0.0
        %2547 = vmatpush.msra.mxu0 0.0
        %2548 = vmatpush.msra.mxu0 0.0
        %2549 = vmatpush.msra.mxu0 0.0
        %2550 = vmatpush.msra.mxu0 0.0
        %2551 = vmatpush.msra.mxu0 0.0
        %2552 = vmatpush.msra.mxu0 0.0
        %2553 = vmatpush.msra.mxu0 %v2034
        %2554 = vmatpush.msra.mxu0 %v1922
        %2555 = vmatmul.f32.gmra.mxu0 %v2534
        %v2556 = vpop.f32.mrf.mxu0
        %v2557 = vadd.f32 0.0, %v2556
        %2558 = vmatmul.f32.gmra.mxu0 %v2537
        %v2559 = vpop.f32.mrf.mxu0
        %v2560 = vadd.f32 0.0, %v2559
        %2561 = vdwg.mxu0
        %v2563 = vsel %vm2047, %v2492, 0
        %v2566 = vsel %vm2047, %v2493, 0
        %2568 = vmatpush.msra.mxu0 0.0
        %2569 = vmatpush.msra.mxu0 0.0
        %2570 = vmatpush.msra.mxu0 0.0
        %2571 = vmatpush.msra.mxu0 0.0
        %2572 = vmatpush.msra.mxu0 0.0
        %2573 = vmatpush.msra.mxu0 0.0
        %2574 = vmatpush.msra.mxu0 0.0
        %2575 = vmatpush.msra.mxu0 0.0
        %2576 = vmatpush.msra.mxu0 0.0
        %2577 = vmatpush.msra.mxu0 0.0
        %2578 = vmatpush.msra.mxu0 0.0
        %2579 = vmatpush.msra.mxu0 0.0
        %2580 = vmatpush.msra.mxu0 0.0
        %2581 = vmatpush.msra.mxu0 0.0
        %2582 = vmatpush.msra.mxu0 %v2036
        %2583 = vmatpush.msra.mxu0 %v1924
        %2584 = vmatmul.f32.gmra.mxu0 %v2563
        %v2585 = vpop.f32.mrf.mxu0
        %v2586 = vadd.f32 0.0, %v2585
        %2587 = vmatmul.f32.gmra.mxu0 %v2566
        %v2588 = vpop.f32.mrf.mxu0
        %v2589 = vadd.f32 0.0, %v2588
        %2590 = vdwg.mxu0
        %v2592 = vsel %vm2047, %v2494, 0
        %v2595 = vsel %vm2047, %v2495, 0
        %2597 = vmatpush.msra.mxu0 0.0
        %2598 = vmatpush.msra.mxu0 0.0
        %2599 = vmatpush.msra.mxu0 0.0
        %2600 = vmatpush.msra.mxu0 0.0
        %2601 = vmatpush.msra.mxu0 0.0
        %2602 = vmatpush.msra.mxu0 0.0
        %2603 = vmatpush.msra.mxu0 0.0
        %2604 = vmatpush.msra.mxu0 0.0
        %2605 = vmatpush.msra.mxu0 0.0
        %2606 = vmatpush.msra.mxu0 0.0
        %2607 = vmatpush.msra.mxu0 0.0
        %2608 = vmatpush.msra.mxu0 0.0
        %2609 = vmatpush.msra.mxu0 0.0
        %2610 = vmatpush.msra.mxu0 0.0
        %2611 = vmatpush.msra.mxu0 %v2038
        %2612 = vmatpush.msra.mxu0 %v1926
        %2613 = vmatmul.f32.gmra.mxu0 %v2592
        %v2614 = vpop.f32.mrf.mxu0
        %v2615 = vadd.f32 0.0, %v2614
        %2616 = vmatmul.f32.gmra.mxu0 %v2595
        %v2617 = vpop.f32.mrf.mxu0
        %v2618 = vadd.f32 0.0, %v2617
        %2619 = vdwg.mxu0
        %v2621 = vsel %vm2047, %v2496, 0
        %v2624 = vsel %vm2047, %v2497, 0
        %2626 = vmatpush.msra.mxu0 0.0
        %2627 = vmatpush.msra.mxu0 0.0
        %2628 = vmatpush.msra.mxu0 0.0
        %2629 = vmatpush.msra.mxu0 0.0
        %2630 = vmatpush.msra.mxu0 0.0
        %2631 = vmatpush.msra.mxu0 0.0
        %2632 = vmatpush.msra.mxu0 0.0
        %2633 = vmatpush.msra.mxu0 0.0
        %2634 = vmatpush.msra.mxu0 0.0
        %2635 = vmatpush.msra.mxu0 0.0
        %2636 = vmatpush.msra.mxu0 0.0
        %2637 = vmatpush.msra.mxu0 0.0
        %2638 = vmatpush.msra.mxu0 0.0
        %2639 = vmatpush.msra.mxu0 0.0
        %2640 = vmatpush.msra.mxu0 %v2040
        %2641 = vmatpush.msra.mxu0 %v1928
        %2642 = vmatmul.f32.gmra.mxu0 %v2621
        %v2643 = vpop.f32.mrf.mxu0
        %v2644 = vadd.f32 0.0, %v2643
        %2645 = vmatmul.f32.gmra.mxu0 %v2624
        %v2646 = vpop.f32.mrf.mxu0
        %v2647 = vadd.f32 0.0, %v2646
        %2648 = vdwg.mxu0
        %v2650 = vsel %vm2047, %v2498, 0
        %v2653 = vsel %vm2047, %v2499, 0
        %2655 = vmatpush.msra.mxu0 0.0
        %2656 = vmatpush.msra.mxu0 0.0
        %2657 = vmatpush.msra.mxu0 0.0
        %2658 = vmatpush.msra.mxu0 0.0
        %2659 = vmatpush.msra.mxu0 0.0
        %2660 = vmatpush.msra.mxu0 0.0
        %2661 = vmatpush.msra.mxu0 0.0
        %2662 = vmatpush.msra.mxu0 0.0
        %2663 = vmatpush.msra.mxu0 0.0
        %2664 = vmatpush.msra.mxu0 0.0
        %2665 = vmatpush.msra.mxu0 0.0
        %2666 = vmatpush.msra.mxu0 0.0
        %2667 = vmatpush.msra.mxu0 0.0
        %2668 = vmatpush.msra.mxu0 0.0
        %2669 = vmatpush.msra.mxu0 %v2042
        %2670 = vmatpush.msra.mxu0 %v1930
        %2671 = vmatmul.f32.gmra.mxu0 %v2650
        %v2672 = vpop.f32.mrf.mxu0
        %v2673 = vadd.f32 0.0, %v2672
        %2674 = vmatmul.f32.gmra.mxu0 %v2653
        %v2675 = vpop.f32.mrf.mxu0
        %v2676 = vadd.f32 0.0, %v2675
        %2677 = vdwg.mxu0
        %v2679 = vsel %vm2047, %v2500, 0
        %v2682 = vsel %vm2047, %v2501, 0
        %2684 = vmatpush.msra.mxu0 0.0
        %2685 = vmatpush.msra.mxu0 0.0
        %2686 = vmatpush.msra.mxu0 0.0
        %2687 = vmatpush.msra.mxu0 0.0
        %2688 = vmatpush.msra.mxu0 0.0
        %2689 = vmatpush.msra.mxu0 0.0
        %2690 = vmatpush.msra.mxu0 0.0
        %2691 = vmatpush.msra.mxu0 0.0
        %2692 = vmatpush.msra.mxu0 0.0
        %2693 = vmatpush.msra.mxu0 0.0
        %2694 = vmatpush.msra.mxu0 0.0
        %2695 = vmatpush.msra.mxu0 0.0
        %2696 = vmatpush.msra.mxu0 0.0
        %2697 = vmatpush.msra.mxu0 0.0
        %2698 = vmatpush.msra.mxu0 %v2044
        %2699 = vmatpush.msra.mxu0 %v1932
        %2700 = vmatmul.f32.gmra.mxu0 %v2679
        %v2701 = vpop.f32.mrf.mxu0
        %v2702 = vadd.f32 0.0, %v2701
        %2703 = vmatmul.f32.gmra.mxu0 %v2682
        %v2704 = vpop.f32.mrf.mxu0
        %v2705 = vadd.f32 0.0, %v2704
        %2706 = vdwg.mxu0
        %v2708 = vsel %vm2047, %v2502, 0
        %v2711 = vsel %vm2047, %v2503, 0
        %2713 = vmatpush.msra.mxu0 0.0
        %2714 = vmatpush.msra.mxu0 0.0
        %2715 = vmatpush.msra.mxu0 0.0
        %2716 = vmatpush.msra.mxu0 0.0
        %2717 = vmatpush.msra.mxu0 0.0
        %2718 = vmatpush.msra.mxu0 0.0
        %2719 = vmatpush.msra.mxu0 0.0
        %2720 = vmatpush.msra.mxu0 0.0
        %2721 = vmatpush.msra.mxu0 0.0
        %2722 = vmatpush.msra.mxu0 0.0
        %2723 = vmatpush.msra.mxu0 0.0
        %2724 = vmatpush.msra.mxu0 0.0
        %2725 = vmatpush.msra.mxu0 0.0
        %2726 = vmatpush.msra.mxu0 0.0
        %2727 = vmatpush.msra.mxu0 %v2046
        %2728 = vmatpush.msra.mxu0 %v1934
        %2729 = vmatmul.f32.gmra.mxu0 %v2708
        %v2730 = vpop.f32.mrf.mxu0
        %v2731 = vadd.f32 0.0, %v2730
        %2732 = vmatmul.f32.gmra.mxu0 %v2711
        %v2733 = vpop.f32.mrf.mxu0
        %v2734 = vadd.f32 0.0, %v2733
        %2735 = vdwg.mxu0
        %v2736 = vrot.slane %v2586, 4
        %v2737 = vsel %vm615, %v2736, %v2528
        %v2738 = vrot.slane %v2528, 4
        %v2739 = vsel %vm615, %v2586, %v2738
        %v2741 = vunpack.c.l.s4 1983009808
        %v2742 = vunpack.c.0.s8 %v2741
        %v2743 = vperm.slane %v2737, %v2742
        %v2745 = vunpack.c.l.s4 1983009808
        %v2746 = vunpack.c.0.s8 %v2745
        %v2747 = vperm.slane %v2739, %v2746
        %v2748 = vrot.slane %v2615, 4
        %v2749 = vsel %vm615, %v2748, %v2557
        %v2750 = vrot.slane %v2557, 4
        %v2751 = vsel %vm615, %v2615, %v2750
        %v2753 = vunpack.c.l.s4 1983009808
        %v2754 = vunpack.c.0.s8 %v2753
        %v2755 = vperm.slane %v2749, %v2754
        %v2757 = vunpack.c.l.s4 1983009808
        %v2758 = vunpack.c.0.s8 %v2757
        %v2759 = vperm.slane %v2751, %v2758
        %v2760 = vrot.slane %v2702, 4
        %v2761 = vsel %vm615, %v2760, %v2644
        %v2762 = vrot.slane %v2644, 4
        %v2763 = vsel %vm615, %v2702, %v2762
        %v2765 = vunpack.c.l.s4 1983009808
        %v2766 = vunpack.c.0.s8 %v2765
        %v2767 = vperm.slane %v2761, %v2766
        %v2769 = vunpack.c.l.s4 1983009808
        %v2770 = vunpack.c.0.s8 %v2769
        %v2771 = vperm.slane %v2763, %v2770
        %v2772 = vrot.slane %v2731, 4
        %v2773 = vsel %vm615, %v2772, %v2673
        %v2774 = vrot.slane %v2673, 4
        %v2775 = vsel %vm615, %v2731, %v2774
        %v2777 = vunpack.c.l.s4 1983009808
        %v2778 = vunpack.c.0.s8 %v2777
        %v2779 = vperm.slane %v2773, %v2778
        %v2781 = vunpack.c.l.s4 1983009808
        %v2782 = vunpack.c.0.s8 %v2781
        %v2783 = vperm.slane %v2775, %v2782
        %v2784 = vrot.slane %v2755, 4
        %v2785 = vsel %vm615, %v2784, %v2743
        %v2786 = vrot.slane %v2743, 4
        %v2787 = vsel %vm615, %v2755, %v2786
        %v2789 = vunpack.c.l.s4 1934713408
        %v2790 = vunpack.c.0.s8 %v2789
        %v2791 = vperm.slane %v2785, %v2790
        %v2793 = vunpack.c.l.s4 1934713408
        %v2794 = vunpack.c.0.s8 %v2793
        %v2795 = vperm.slane %v2787, %v2794
        %v2796 = vrot.slane %v2759, 4
        %v2797 = vsel %vm615, %v2796, %v2747
        %v2798 = vrot.slane %v2747, 4
        %v2799 = vsel %vm615, %v2759, %v2798
        %v2801 = vunpack.c.l.s4 1934713408
        %v2802 = vunpack.c.0.s8 %v2801
        %v2803 = vperm.slane %v2797, %v2802
        %v2805 = vunpack.c.l.s4 1934713408
        %v2806 = vunpack.c.0.s8 %v2805
        %v2807 = vperm.slane %v2799, %v2806
        %v2808 = vrot.slane %v2779, 4
        %v2809 = vsel %vm615, %v2808, %v2767
        %v2810 = vrot.slane %v2767, 4
        %v2811 = vsel %vm615, %v2779, %v2810
        %v2813 = vunpack.c.l.s4 1934713408
        %v2814 = vunpack.c.0.s8 %v2813
        %v2815 = vperm.slane %v2809, %v2814
        %v2817 = vunpack.c.l.s4 1934713408
        %v2818 = vunpack.c.0.s8 %v2817
        %v2819 = vperm.slane %v2811, %v2818
        %v2820 = vrot.slane %v2783, 4
        %v2821 = vsel %vm615, %v2820, %v2771
        %v2822 = vrot.slane %v2771, 4
        %v2823 = vsel %vm615, %v2783, %v2822
        %v2825 = vunpack.c.l.s4 1934713408
        %v2826 = vunpack.c.0.s8 %v2825
        %v2827 = vperm.slane %v2821, %v2826
        %v2829 = vunpack.c.l.s4 1934713408
        %v2830 = vunpack.c.0.s8 %v2829
        %v2831 = vperm.slane %v2823, %v2830
        %v2832 = vrot.slane %v2815, 4
        %v2833 = vsel %vm615, %v2832, %v2791
        %v2834 = vrot.slane %v2791, 4
        %v2835 = vsel %vm615, %v2815, %v2834
        %v2836 = vrot.slane %v2819, 4
        %v2837 = vsel %vm615, %v2836, %v2795
        %v2838 = vrot.slane %v2795, 4
        %v2839 = vsel %vm615, %v2819, %v2838
        %v2840 = vrot.slane %v2827, 4
        %v2841 = vsel %vm615, %v2840, %v2803
        %v2842 = vrot.slane %v2803, 4
        %v2843 = vsel %vm615, %v2827, %v2842
        %v2844 = vrot.slane %v2831, 4
        %v2845 = vsel %vm615, %v2844, %v2807
        %v2846 = vrot.slane %v2807, 4
        %v2847 = vsel %vm615, %v2831, %v2846
        %v2848 = vrot.slane %v2589, 4
        %v2849 = vsel %vm615, %v2848, %v2531
        %v2850 = vrot.slane %v2531, 4
        %v2851 = vsel %vm615, %v2589, %v2850
        %v2853 = vunpack.c.l.s4 1983009808
        %v2854 = vunpack.c.0.s8 %v2853
        %v2855 = vperm.slane %v2849, %v2854
        %v2857 = vunpack.c.l.s4 1983009808
        %v2858 = vunpack.c.0.s8 %v2857
        %v2859 = vperm.slane %v2851, %v2858
        %v2860 = vrot.slane %v2618, 4
        %v2861 = vsel %vm615, %v2860, %v2560
        %v2862 = vrot.slane %v2560, 4
        %v2863 = vsel %vm615, %v2618, %v2862
        %v2865 = vunpack.c.l.s4 1983009808
        %v2866 = vunpack.c.0.s8 %v2865
        %v2867 = vperm.slane %v2861, %v2866
        %v2869 = vunpack.c.l.s4 1983009808
        %v2870 = vunpack.c.0.s8 %v2869
        %v2871 = vperm.slane %v2863, %v2870
        %v2872 = vrot.slane %v2705, 4
        %v2873 = vsel %vm615, %v2872, %v2647
        %v2874 = vrot.slane %v2647, 4
        %v2875 = vsel %vm615, %v2705, %v2874
        %v2877 = vunpack.c.l.s4 1983009808
        %v2878 = vunpack.c.0.s8 %v2877
        %v2879 = vperm.slane %v2873, %v2878
        %v2881 = vunpack.c.l.s4 1983009808
        %v2882 = vunpack.c.0.s8 %v2881
        %v2883 = vperm.slane %v2875, %v2882
        %v2884 = vrot.slane %v2734, 4
        %v2885 = vsel %vm615, %v2884, %v2676
        %v2886 = vrot.slane %v2676, 4
        %v2887 = vsel %vm615, %v2734, %v2886
        %v2889 = vunpack.c.l.s4 1983009808
        %v2890 = vunpack.c.0.s8 %v2889
        %v2891 = vperm.slane %v2885, %v2890
        %v2893 = vunpack.c.l.s4 1983009808
        %v2894 = vunpack.c.0.s8 %v2893
        %v2895 = vperm.slane %v2887, %v2894
        %v2896 = vrot.slane %v2867, 4
        %v2897 = vsel %vm615, %v2896, %v2855
        %v2898 = vrot.slane %v2855, 4
        %v2899 = vsel %vm615, %v2867, %v2898
        %v2901 = vunpack.c.l.s4 1934713408
        %v2902 = vunpack.c.0.s8 %v2901
        %v2903 = vperm.slane %v2897, %v2902
        %v2905 = vunpack.c.l.s4 1934713408
        %v2906 = vunpack.c.0.s8 %v2905
        %v2907 = vperm.slane %v2899, %v2906
        %v2908 = vrot.slane %v2871, 4
        %v2909 = vsel %vm615, %v2908, %v2859
        %v2910 = vrot.slane %v2859, 4
        %v2911 = vsel %vm615, %v2871, %v2910
        %v2913 = vunpack.c.l.s4 1934713408
        %v2914 = vunpack.c.0.s8 %v2913
        %v2915 = vperm.slane %v2909, %v2914
        %v2917 = vunpack.c.l.s4 1934713408
        %v2918 = vunpack.c.0.s8 %v2917
        %v2919 = vperm.slane %v2911, %v2918
        %v2920 = vrot.slane %v2891, 4
        %v2921 = vsel %vm615, %v2920, %v2879
        %v2922 = vrot.slane %v2879, 4
        %v2923 = vsel %vm615, %v2891, %v2922
        %v2925 = vunpack.c.l.s4 1934713408
        %v2926 = vunpack.c.0.s8 %v2925
        %v2927 = vperm.slane %v2921, %v2926
        %v2929 = vunpack.c.l.s4 1934713408
        %v2930 = vunpack.c.0.s8 %v2929
        %v2931 = vperm.slane %v2923, %v2930
        %v2932 = vrot.slane %v2895, 4
        %v2933 = vsel %vm615, %v2932, %v2883
        %v2934 = vrot.slane %v2883, 4
        %v2935 = vsel %vm615, %v2895, %v2934
        %v2937 = vunpack.c.l.s4 1934713408
        %v2938 = vunpack.c.0.s8 %v2937
        %v2939 = vperm.slane %v2933, %v2938
        %v2941 = vunpack.c.l.s4 1934713408
        %v2942 = vunpack.c.0.s8 %v2941
        %v2943 = vperm.slane %v2935, %v2942
        %v2944 = vrot.slane %v2927, 4
        %v2945 = vsel %vm615, %v2944, %v2903
        %v2946 = vrot.slane %v2903, 4
        %v2947 = vsel %vm615, %v2927, %v2946
        %v2948 = vrot.slane %v2931, 4
        %v2949 = vsel %vm615, %v2948, %v2907
        %v2950 = vrot.slane %v2907, 4
        %v2951 = vsel %vm615, %v2931, %v2950
        %v2952 = vrot.slane %v2939, 4
        %v2953 = vsel %vm615, %v2952, %v2915
        %v2954 = vrot.slane %v2915, 4
        %v2955 = vsel %vm615, %v2939, %v2954
        %v2956 = vrot.slane %v2943, 4
        %v2957 = vsel %vm615, %v2956, %v2919
        %v2958 = vrot.slane %v2919, 4
        %v2959 = vsel %vm615, %v2943, %v2958
        %v2960 = vrot.slane %v2837, 4
        %v2961 = vsel %vm615, %v2960, %v2833
        %v2962 = vrot.slane %v2833, 4
        %v2963 = vsel %vm615, %v2837, %v2962
        %v2965 = vunpack.c.l.s4 1983009808
        %v2966 = vunpack.c.0.s8 %v2965
        %v2967 = vperm.slane %v2961, %v2966
        %v2969 = vunpack.c.l.s4 1983009808
        %v2970 = vunpack.c.0.s8 %v2969
        %v2971 = vperm.slane %v2963, %v2970
        %v2972 = vrot.slane %v2839, 4
        %v2973 = vsel %vm615, %v2972, %v2835
        %v2974 = vrot.slane %v2835, 4
        %v2975 = vsel %vm615, %v2839, %v2974
        %v2977 = vunpack.c.l.s4 1983009808
        %v2978 = vunpack.c.0.s8 %v2977
        %v2979 = vperm.slane %v2973, %v2978
        %v2981 = vunpack.c.l.s4 1983009808
        %v2982 = vunpack.c.0.s8 %v2981
        %v2983 = vperm.slane %v2975, %v2982
        %v2984 = vrot.slane %v2845, 4
        %v2985 = vsel %vm615, %v2984, %v2841
        %v2986 = vrot.slane %v2841, 4
        %v2987 = vsel %vm615, %v2845, %v2986
        %v2989 = vunpack.c.l.s4 1983009808
        %v2990 = vunpack.c.0.s8 %v2989
        %v2991 = vperm.slane %v2985, %v2990
        %v2993 = vunpack.c.l.s4 1983009808
        %v2994 = vunpack.c.0.s8 %v2993
        %v2995 = vperm.slane %v2987, %v2994
        %v2996 = vrot.slane %v2847, 4
        %v2997 = vsel %vm615, %v2996, %v2843
        %v2998 = vrot.slane %v2843, 4
        %v2999 = vsel %vm615, %v2847, %v2998
        %v3001 = vunpack.c.l.s4 1983009808
        %v3002 = vunpack.c.0.s8 %v3001
        %v3003 = vperm.slane %v2997, %v3002
        %v3005 = vunpack.c.l.s4 1983009808
        %v3006 = vunpack.c.0.s8 %v3005
        %v3007 = vperm.slane %v2999, %v3006
        %v3008 = vrot.slane %v2979, 4
        %v3009 = vsel %vm615, %v3008, %v2967
        %v3010 = vrot.slane %v2967, 4
        %v3011 = vsel %vm615, %v2979, %v3010
        %v3013 = vunpack.c.l.s4 1934713408
        %v3014 = vunpack.c.0.s8 %v3013
        %v3015 = vperm.slane %v3009, %v3014
        %v3017 = vunpack.c.l.s4 1934713408
        %v3018 = vunpack.c.0.s8 %v3017
        %v3019 = vperm.slane %v3011, %v3018
        %v3020 = vrot.slane %v2983, 4
        %v3021 = vsel %vm615, %v3020, %v2971
        %v3022 = vrot.slane %v2971, 4
        %v3023 = vsel %vm615, %v2983, %v3022
        %v3025 = vunpack.c.l.s4 1934713408
        %v3026 = vunpack.c.0.s8 %v3025
        %v3027 = vperm.slane %v3021, %v3026
        %v3029 = vunpack.c.l.s4 1934713408
        %v3030 = vunpack.c.0.s8 %v3029
        %v3031 = vperm.slane %v3023, %v3030
        %v3032 = vrot.slane %v3003, 4
        %v3033 = vsel %vm615, %v3032, %v2991
        %v3034 = vrot.slane %v2991, 4
        %v3035 = vsel %vm615, %v3003, %v3034
        %v3037 = vunpack.c.l.s4 1934713408
        %v3038 = vunpack.c.0.s8 %v3037
        %v3039 = vperm.slane %v3033, %v3038
        %v3041 = vunpack.c.l.s4 1934713408
        %v3042 = vunpack.c.0.s8 %v3041
        %v3043 = vperm.slane %v3035, %v3042
        %v3044 = vrot.slane %v3007, 4
        %v3045 = vsel %vm615, %v3044, %v2995
        %v3046 = vrot.slane %v2995, 4
        %v3047 = vsel %vm615, %v3007, %v3046
        %v3049 = vunpack.c.l.s4 1934713408
        %v3050 = vunpack.c.0.s8 %v3049
        %v3051 = vperm.slane %v3045, %v3050
        %v3053 = vunpack.c.l.s4 1934713408
        %v3054 = vunpack.c.0.s8 %v3053
        %v3055 = vperm.slane %v3047, %v3054
        %v3056 = vrot.slane %v3039, 4
        %v3057 = vsel %vm615, %v3056, %v3015
        %v3058 = vrot.slane %v3015, 4
        %v3059 = vsel %vm615, %v3039, %v3058
        %v3060 = vrot.slane %v3043, 4
        %v3061 = vsel %vm615, %v3060, %v3019
        %v3062 = vrot.slane %v3019, 4
        %v3063 = vsel %vm615, %v3043, %v3062
        %v3064 = vrot.slane %v3051, 4
        %v3065 = vsel %vm615, %v3064, %v3027
        %v3066 = vrot.slane %v3027, 4
        %v3067 = vsel %vm615, %v3051, %v3066
        %v3068 = vrot.slane %v3055, 4
        %v3069 = vsel %vm615, %v3068, %v3031
        %v3070 = vrot.slane %v3031, 4
        %v3071 = vsel %vm615, %v3055, %v3070
        %v3072 = vrot.slane %v2949, 4
        %v3073 = vsel %vm615, %v3072, %v2945
        %v3074 = vrot.slane %v2945, 4
        %v3075 = vsel %vm615, %v2949, %v3074
        %v3077 = vunpack.c.l.s4 1983009808
        %v3078 = vunpack.c.0.s8 %v3077
        %v3079 = vperm.slane %v3073, %v3078
        %v3081 = vunpack.c.l.s4 1983009808
        %v3082 = vunpack.c.0.s8 %v3081
        %v3083 = vperm.slane %v3075, %v3082
        %v3084 = vrot.slane %v2951, 4
        %v3085 = vsel %vm615, %v3084, %v2947
        %v3086 = vrot.slane %v2947, 4
        %v3087 = vsel %vm615, %v2951, %v3086
        %v3089 = vunpack.c.l.s4 1983009808
        %v3090 = vunpack.c.0.s8 %v3089
        %v3091 = vperm.slane %v3085, %v3090
        %v3093 = vunpack.c.l.s4 1983009808
        %v3094 = vunpack.c.0.s8 %v3093
        %v3095 = vperm.slane %v3087, %v3094
        %v3096 = vrot.slane %v2957, 4
        %v3097 = vsel %vm615, %v3096, %v2953
        %v3098 = vrot.slane %v2953, 4
        %v3099 = vsel %vm615, %v2957, %v3098
        %v3101 = vunpack.c.l.s4 1983009808
        %v3102 = vunpack.c.0.s8 %v3101
        %v3103 = vperm.slane %v3097, %v3102
        %v3105 = vunpack.c.l.s4 1983009808
        %v3106 = vunpack.c.0.s8 %v3105
        %v3107 = vperm.slane %v3099, %v3106
        %v3108 = vrot.slane %v2959, 4
        %v3109 = vsel %vm615, %v3108, %v2955
        %v3110 = vrot.slane %v2955, 4
        %v3111 = vsel %vm615, %v2959, %v3110
        %v3113 = vunpack.c.l.s4 1983009808
        %v3114 = vunpack.c.0.s8 %v3113
        %v3115 = vperm.slane %v3109, %v3114
        %v3117 = vunpack.c.l.s4 1983009808
        %v3118 = vunpack.c.0.s8 %v3117
        %v3119 = vperm.slane %v3111, %v3118
        %v3120 = vrot.slane %v3091, 4
        %v3121 = vsel %vm615, %v3120, %v3079
        %v3122 = vrot.slane %v3079, 4
        %v3123 = vsel %vm615, %v3091, %v3122
        %v3125 = vunpack.c.l.s4 1934713408
        %v3126 = vunpack.c.0.s8 %v3125
        %v3127 = vperm.slane %v3121, %v3126
        %v3129 = vunpack.c.l.s4 1934713408
        %v3130 = vunpack.c.0.s8 %v3129
        %v3131 = vperm.slane %v3123, %v3130
        %v3132 = vrot.slane %v3095, 4
        %v3133 = vsel %vm615, %v3132, %v3083
        %v3134 = vrot.slane %v3083, 4
        %v3135 = vsel %vm615, %v3095, %v3134
        %v3137 = vunpack.c.l.s4 1934713408
        %v3138 = vunpack.c.0.s8 %v3137
        %v3139 = vperm.slane %v3133, %v3138
        %v3141 = vunpack.c.l.s4 1934713408
        %v3142 = vunpack.c.0.s8 %v3141
        %v3143 = vperm.slane %v3135, %v3142
        %v3144 = vrot.slane %v3115, 4
        %v3145 = vsel %vm615, %v3144, %v3103
        %v3146 = vrot.slane %v3103, 4
        %v3147 = vsel %vm615, %v3115, %v3146
        %v3149 = vunpack.c.l.s4 1934713408
        %v3150 = vunpack.c.0.s8 %v3149
        %v3151 = vperm.slane %v3145, %v3150
        %v3153 = vunpack.c.l.s4 1934713408
        %v3154 = vunpack.c.0.s8 %v3153
        %v3155 = vperm.slane %v3147, %v3154
        %v3156 = vrot.slane %v3119, 4
        %v3157 = vsel %vm615, %v3156, %v3107
        %v3158 = vrot.slane %v3107, 4
        %v3159 = vsel %vm615, %v3119, %v3158
        %v3161 = vunpack.c.l.s4 1934713408
        %v3162 = vunpack.c.0.s8 %v3161
        %v3163 = vperm.slane %v3157, %v3162
        %v3165 = vunpack.c.l.s4 1934713408
        %v3166 = vunpack.c.0.s8 %v3165
        %v3167 = vperm.slane %v3159, %v3166
        %v3168 = vrot.slane %v3151, 4
        %v3169 = vsel %vm615, %v3168, %v3127
        %v3170 = vrot.slane %v3127, 4
        %v3171 = vsel %vm615, %v3151, %v3170
        %v3172 = vrot.slane %v3155, 4
        %v3173 = vsel %vm615, %v3172, %v3131
        %v3174 = vrot.slane %v3131, 4
        %v3175 = vsel %vm615, %v3155, %v3174
        %v3176 = vrot.slane %v3163, 4
        %v3177 = vsel %vm615, %v3176, %v3139
        %v3178 = vrot.slane %v3139, 4
        %v3179 = vsel %vm615, %v3163, %v3178
        %v3180 = vrot.slane %v3167, 4
        %v3181 = vsel %vm615, %v3180, %v3143
        %v3182 = vrot.slane %v3143, 4
        %v3183 = vsel %vm615, %v3167, %v3182
        %3186 = vrot.lane.b32.xlu0 %v3059, 16
        %v3187 = vpop.permute.xlu0 %3186
        %3188 = vrot.lane.b32.xlu0 %v3171, 16
        %v3189 = vpop.permute.xlu0 %3188
        %3194 = vrot.lane.b32.xlu0 %v3061, 32
        %v3195 = vpop.permute.xlu0 %3194
        %3196 = vrot.lane.b32.xlu0 %v3173, 32
        %v3197 = vpop.permute.xlu0 %3196
        %3202 = vrot.lane.b32.xlu0 %v3063, 48
        %v3203 = vpop.permute.xlu0 %3202
        %3204 = vrot.lane.b32.xlu0 %v3175, 48
        %v3205 = vpop.permute.xlu0 %3204
        %3210 = vrot.lane.b32.xlu0 %v3065, 64
        %v3211 = vpop.permute.xlu0 %3210
        %3212 = vrot.lane.b32.xlu0 %v3177, 64
        %v3213 = vpop.permute.xlu0 %3212
        %3218 = vrot.lane.b32.xlu0 %v3067, 80
        %v3219 = vpop.permute.xlu0 %3218
        %3220 = vrot.lane.b32.xlu0 %v3179, 80
        %v3221 = vpop.permute.xlu0 %3220
        %3226 = vrot.lane.b32.xlu0 %v3069, 96
        %v3227 = vpop.permute.xlu0 %3226
        %3228 = vrot.lane.b32.xlu0 %v3181, 96
        %v3229 = vpop.permute.xlu0 %3228
        %3234 = vrot.lane.b32.xlu0 %v3071, 112
        %v3235 = vpop.permute.xlu0 %3234
        %3236 = vrot.lane.b32.xlu0 %v3183, 112
        %v3237 = vpop.permute.xlu0 %3236
        %v3240 = vsel %vm2047, %v3057, %v3187
        %v3241 = vsel %vm2047, %v3169, %v3189
        %vm3242 = vcmask 261120
        %v3243 = vsel %vm3242, %v3240, %v3195
        %v3244 = vsel %vm3242, %v3241, %v3197
        %vm3245 = vcmask 392192
        %v3246 = vsel %vm3245, %v3243, %v3203
        %v3247 = vsel %vm3245, %v3244, %v3205
        %vm3248 = vcmask 523264
        %v3249 = vsel %vm3248, %v3246, %v3211
        %v3250 = vsel %vm3248, %v3247, %v3213
        %vm3251 = vcmask 654336
        %v3252 = vsel %vm3251, %v3249, %v3219
        %v3253 = vsel %vm3251, %v3250, %v3221
        %vm3254 = vcmask 785408
        %v3255 = vsel %vm3254, %v3252, %v3227
        %v3256 = vsel %vm3254, %v3253, %v3229
        %vm3257 = vcmask 916480
        %v3258 = vsel %vm3257, %v3255, %v3235
        %v3259 = vsel %vm3257, %v3256, %v3237
        %v3260 = vld [vmem:[#allocation10] sm:$0xff]
        %v3261 = vld [vmem:[#allocation10 + $0x8] sm:$0xff]
        %v3262 = vld [vmem:[#allocation10 + $0x10] sm:$0xff]
        %v3263 = vld [vmem:[#allocation10 + $0x18] sm:$0xff]
        %v3264 = vld [vmem:[#allocation10 + $0x20] sm:$0xff]
        %v3265 = vld [vmem:[#allocation10 + $0x28] sm:$0xff]
        %v3266 = vld [vmem:[#allocation10 + $0x30] sm:$0xff]
        %v3267 = vld [vmem:[#allocation10 + $0x38] sm:$0xff]
        %v3268 = vld [vmem:[#allocation10 + $0x40] sm:$0xff]
        %v3269 = vld [vmem:[#allocation10 + $0x48] sm:$0xff]
        %v3270 = vld [vmem:[#allocation10 + $0x50] sm:$0xff]
        %v3271 = vld [vmem:[#allocation10 + $0x58] sm:$0xff]
        %v3272 = vld [vmem:[#allocation10 + $0x60] sm:$0xff]
        %v3273 = vld [vmem:[#allocation10 + $0x68] sm:$0xff]
        %v3274 = vld [vmem:[#allocation10 + $0x70] sm:$0xff]
        %v3275 = vld [vmem:[#allocation10 + $0x78] sm:$0xff]
        %v3276 = vld [vmem:[%s7] sm:$0x1]
        %v3278 = vperm.slane %v3276, 0
        %3280 = vmatpush.msra.mxu0 %v3275
        %3281 = vmatpush.msra.mxu0 %v3274
        %3282 = vmatpush.msra.mxu0 %v3273
        %3283 = vmatpush.msra.mxu0 %v3272
        %3284 = vmatpush.msra.mxu0 %v3271
        %3285 = vmatpush.msra.mxu0 %v3270
        %3286 = vmatpush.msra.mxu0 %v3269
        %3287 = vmatpush.msra.mxu0 %v3268
        %3288 = vmatpush.msra.mxu0 %v3267
        %3289 = vmatpush.msra.mxu0 %v3266
        %3290 = vmatpush.msra.mxu0 %v3265
        %3291 = vmatpush.msra.mxu0 %v3264
        %3292 = vmatpush.msra.mxu0 %v3263
        %3293 = vmatpush.msra.mxu0 %v3262
        %3294 = vmatpush.msra.mxu0 %v3261
        %3295 = vmatpush.msra.mxu0 %v3260
        %3296 = vmatmul.f32.gmra.mxu0 %v3258
        %v3297 = vpop.f32.mrf.mxu0
        %v3298 = vadd.f32 %v3278, %v3297
        %3299 = vmatmul.f32.gmra.mxu0 %v3259
        %v3300 = vpop.f32.mrf.mxu0
        %v3301 = vadd.f32 %v3278, %v3300
        %3302 = vdwg.mxu0
        %3303 = vst [vmem:[%s434] sm:$0xff] %v3298
        %3304 = vst [vmem:[%s434 + $0x8] sm:$0xff] %v3301
        %s3305 = sand.u32 %s231, 1
        %s3306 = scalar_lea.sflag [#allocation4], %s3305
        %s3307 = sand.u32 %s231, 1
        %s3308 = smul.addr %s3307, 16
        %s3309 = scalar_lea.vmem [#allocation11], %s3308
        // Predicated region
        $region73: #{tpu_custom_call.1} parent=51 // pred_check
          %p3310 = pneg %p241
        $region74: #{tpu_custom_call.1} parent=51 // pred_check_branch
          %3312 = sbr.rel (%p3310) target = $region76
        $region75: #{tpu_custom_call.1} parent=51 // pred_region
          %s3313 = smul.u32 2, %s34
          %3315 = vsyncadd %s3306, 0
          %s3316 = smul.addr %s33, 2
          %s3317 = sadd.s32 %s3313, %s3316
          %s3318 = smul.addr %s3317, 8
          %s3319 = scalar_lea.hbm %s8, %s3318
          %s3320 = sshll.u32 %s3309, 4
          %s3321 = int_to_ptr.vmem [resolvable:$true] %s3320
          %s3322 = sshll.u32 %s3319, 4
          %s3323 = int_to_ptr.hbm [resolvable:$true] %s3322
          %3328 = dma.vmem_to_hbm [thread:$0]  %s3321, 256, %s3323, %s3306, 128, 128, 8
        $region76: #{tpu_custom_call.1} parent=51 // pred_fallthru
          _
      $region52: #{tpu_custom_call.1} parent=5 // pred_fallthru
        _
      %p3329 = scmp.le.s32.totalorder 2, %s24
      // Predicated region
      $region77: #{tpu_custom_call.1} parent=5 // pred_check
        %p3330 = pneg %p3329
      $region78: #{tpu_custom_call.1} parent=5 // pred_check_branch
        %3332 = sbr.rel (%p3330) target = $region80
      $region79: #{tpu_custom_call.1} parent=5 // pred_region
        %s3333 = ssub.s32 %s24, 2
        // Predicated region
        $region81: #{tpu_custom_call.1} parent=79 // pred_check
          %p3334 = pneg %p247
        $region82: #{tpu_custom_call.1} parent=79 // pred_check_branch
          %3336 = sbr.rel (%p3334) target = $region84
        $region83: #{tpu_custom_call.1} parent=79 // pred_region
          %s3337 = sand.u32 %s232, 1
          %s3338 = scalar_lea.sflag [#allocation4], %s3337
          %s3339 = sand.u32 %s232, 1
          %s3340 = smul.addr %s3339, 16
          %s3341 = scalar_lea.vmem [#allocation11], %s3340
          %3343 = dma.done %s3338, 256
        $region84: #{tpu_custom_call.1} parent=79 // pred_fallthru
          _
      $region80: #{tpu_custom_call.1} parent=5 // pred_fallthru
        _
    $region6: #{tpu_custom_call.1} parent=1 // loop_footer
      %s28 = sadd.s32 1, %s24
    $region7: #{tpu_custom_call.1} parent=1 // loop_footer_branch
      %23 = sbr.rel target = $region3
    $region8: #{tpu_custom_call.1} parent=1 // loop_exit
      _
    %3344 = vsyncpa [#allocation3], 1
    %s3345 = scalar_lea.sflag [#allocation3], 1
    %3346 = vsyncpa %s3345, 1
    %3347 = vsyncpa [#allocation6], 1
    %s3348 = scalar_lea.sflag [#allocation6], 1
    %3349 = vsyncpa %s3348, 1
    %3350 = vsyncpa [#allocation9], 1
    %3351 = vsyncpa [#allocation4], 1
    %s3352 = scalar_lea.sflag [#allocation4], 1
    %3353 = vsyncpa %s3352, 1

</llo_original>
